<compile_context>
chip_gen: v6e
topology: v6e:2x2x1
jax: 0.10.0
libtpu: 0.0.40
codegen_flags: <defaults>
</compile_context>

<pallas_src>
import functools

import jax
import jax.numpy as jnp
from jax import lax
from jax.experimental import pallas as pl
from jax.experimental.pallas import tpu as pltpu

CIN, COUT, K = 3, 16, 3
H = W = 32
HO = WO = 16                      # after 2x2 maxpool
NPOOL = HO * WO                   # 256 pooled positions per image
KK = CIN * K * K                  # 27 im2col rows
FC_IN, FC_OUT = COUT * NPOOL, 10  # 4096 -> 10
LANES = 128                       # pad FC output to a lane-dense width


# ---------------------------------------------------------------------------
# Kernel A: conv + bias + ReLU + 2x2 maxpool for a tile of Btile images
# ---------------------------------------------------------------------------
def conv_relu_pool_kernel(p_ref, w_ref, b_ref, o_ref, *, btile):
    # p_ref: (1, 27, Btile*1024) bf16 phase-major im2col patches
    # w_ref: (16, 27)  bf16 conv weight
    # b_ref: (16, 1)   f32 conv bias
    # o_ref: (Btile, 16, 256) f32 pooled activations, per-image (co, i*16+j) tiles
    y = jnp.dot(w_ref[...], p_ref[0],
                preferred_element_type=jnp.float32)        # (16, Btile*1024) on the MXU
    y = jnp.maximum(y + b_ref[...], 0.0)                   # bias + ReLU (VPU, f32)
    q = btile * NPOOL
    pooled = jnp.maximum(                                   # 2x2 maxpool = max of 4 phase chunks
        jnp.maximum(y[:, 0 * q:1 * q], y[:, 1 * q:2 * q]),
        jnp.maximum(y[:, 2 * q:3 * q], y[:, 3 * q:4 * q]))  # (16, Btile*256)
    for b in range(btile):                                  # lane-aligned per-image slices
        o_ref[b] = pooled[:, b * NPOOL:(b + 1) * NPOOL]


# ---------------------------------------------------------------------------
# Kernel B: fully-connected layer, (TM, 4096) @ (4096, 128) + bias, lane-dense out
# ---------------------------------------------------------------------------
def fc_kernel(x_ref, w_ref, b_ref, o_ref):
    out = jnp.dot(x_ref[...], w_ref[...],
                  preferred_element_type=jnp.float32)       # (TM, 128)
    o_ref[...] = (out + b_ref[...]).astype(o_ref.dtype)


# ---------------------------------------------------------------------------
# Wrappers
# ---------------------------------------------------------------------------
def _choose_btile(batch):
    """Images per grid step: amortize fixed step cost but keep >= 2 steps for megacore."""
    if batch <= 2:
        return 1
    return max(1, min(32, batch // 2))


def im2col_phase_grouped(x, nsteps, btile):
    """(nsteps*btile,3,32,32) -> bf16 (nsteps,27, 4*btile*256);
    column = phase*btile*256 + b*256 + i*16 + j, phase = py*2+px, output pixel (2i+py, 2j+px)."""
    B = x.shape[0]
    xp = jnp.pad(x, ((0, 0), (0, 0), (1, 1), (1, 1)))            # (B,3,34,34)
    taps = [xp[:, :, ky:ky + H, kx:kx + W]                       # contiguous slices only
            for ky in range(K) for kx in range(K)]
    p = jnp.stack(taps, axis=2)                                  # (B,3,9,32,32)
    p = p.reshape(B, KK, HO, 2, WO, 2)                           # (b,k,i,py,j,px)
    p = p.transpose(0, 1, 3, 5, 2, 4)                            # (b,k,py,px,i,j)
    p = p.reshape(nsteps, btile, KK, 2, 2, HO, WO)               # (s,bb,k,py,px,i,j)
    p = p.transpose(0, 2, 3, 4, 1, 5, 6)                         # (s,k,py,px,bb,i,j)
    return p.reshape(nsteps, KK, 4 * btile * NPOOL).astype(jnp.bfloat16)


def conv_relu_pool(x, w_conv, b_conv):
    B = x.shape[0]
    btile = _choose_btile(B)
    nsteps = -(-B // btile)
    bpad = nsteps * btile
    if bpad != B:
        x = jnp.pad(x, ((0, bpad - B), (0, 0), (0, 0), (0, 0)))
    patches = im2col_phase_grouped(x, nsteps, btile)             # (nsteps,27,btile*1024) bf16
    w2 = w_conv.reshape(COUT, KK).astype(jnp.bfloat16)           # (co, ci*9+ky*3+kx)
    b2 = b_conv.reshape(COUT, 1)
    out = pl.pallas_call(
        functools.partial(conv_relu_pool_kernel, btile=btile),
        out_shape=jax.ShapeDtypeStruct((bpad, COUT, NPOOL), jnp.float32),
        grid=(nsteps,),
        in_specs=[
            pl.BlockSpec((1, KK, 4 * btile * NPOOL), lambda s: (s, 0, 0)),
            pl.BlockSpec((COUT, KK), lambda s: (0, 0)),
            pl.BlockSpec((COUT, 1), lambda s: (0, 0)),
        ],
        out_specs=pl.BlockSpec((btile, COUT, NPOOL), lambda s: (s, 0, 0)),
        compiler_params=pltpu.CompilerParams(
            dimension_semantics=("parallel",)),                  # batch tiles -> both TCs
    )(patches, w2, b2)
    # contiguous reshape: flat[b, co*256 + i*16 + j] == torch's x.view(-1, 16*16*16)
    return out.reshape(bpad, FC_IN)


def linear(flat, w_fc, b_fc):
    bflat = flat.shape[0]
    tm = 128
    if bflat <= tm:
        m_block, grid_m, bm = bflat, 1, bflat
    else:
        m_block = tm
        bm = -(-bflat // tm) * tm
        grid_m = bm // tm
        if bm != bflat:
            flat = jnp.pad(flat, ((0, bm - bflat), (0, 0)))
    w_pad = jnp.pad(w_fc.T, ((0, 0), (0, LANES - FC_OUT)))       # (4096, 128): NN matmul, K lane-dense
    b_pad = jnp.pad(b_fc.reshape(1, FC_OUT), ((0, 0), (0, LANES - FC_OUT)))
    out = pl.pallas_call(
        fc_kernel,
        out_shape=jax.ShapeDtypeStruct((bm, LANES), jnp.float32),
        grid=(grid_m,),
        in_specs=[
            pl.BlockSpec((m_block, FC_IN), lambda m: (m, 0)),
            pl.BlockSpec((FC_IN, LANES), lambda m: (0, 0)),      # weight stays VMEM-resident
            pl.BlockSpec((1, LANES), lambda m: (0, 0)),
        ],
        out_specs=pl.BlockSpec((m_block, LANES), lambda m: (m, 0)),
        compiler_params=pltpu.CompilerParams(
            dimension_semantics=("parallel",)),
    )(flat, w_pad, b_pad)
    return out


@jax.jit
def simple_cnn_forward(x, params):
    w_conv, b_conv, w_fc, b_fc = params
    B = x.shape[0]
    flat = conv_relu_pool(x, w_conv, b_conv)      # (Bpad, 4096), torch flatten order
    logits = linear(flat, w_fc, b_fc)             # (Bm, 128) lane-dense
    return logits[:B, :FC_OUT]                    # (B, 10)


def reference_forward(x, params):
    w_conv, b_conv, w_fc, b_fc = params
    y = lax.conv_general_dilated(
        x, w_conv, window_strides=(1, 1), padding=((1, 1), (1, 1)),
        dimension_numbers=("NCHW", "OIHW", "NCHW"))
    y = jnp.maximum(y + b_conv[None, :, None, None], 0.0)
    y = lax.reduce_window(y, -jnp.inf, lax.max, (1, 1, 2, 2), (1, 1, 2, 2), "VALID")
    y = y.reshape(y.shape[0], -1)
    return y @ w_fc.T + b_fc


if __name__ == "__main__":
    key = jax.random.PRNGKey(0)
    k1, k2, k3, k4, k5 = jax.random.split(key, 5)
    # deterministic synthetic parameters (shapes mirror the torch module)
    w_conv = jax.random.normal(k1, (COUT, CIN, K, K), jnp.float32) * 0.1
    b_conv = jax.random.normal(k2, (COUT,), jnp.float32) * 0.1
    w_fc = jax.random.normal(k3, (FC_OUT, FC_IN), jnp.float32) * 0.02
    b_fc = jax.random.normal(k4, (FC_OUT,), jnp.float32) * 0.02
    params = (w_conv, b_conv, w_fc, b_fc)

    x = jax.random.normal(k5, (2, CIN, H, W), jnp.float32)   # NCHW 32x32 (required by fc1)

    out = jax.block_until_ready(simple_cnn_forward(x, params))
    ref = jax.block_until_ready(reference_forward(x, params))
    assert out.shape == (2, FC_OUT)
    # Tolerance accounts for bf16 patch/weight quantization + MXU pass precision vs XLA's
    # conv/dot path (which itself uses bf16 multiply passes for f32 at default precision).
    assert jnp.allclose(out, ref, rtol=1e-2, atol=1e-2), "mismatch vs. pure-JAX reference"
    print("KERNEL_OK")
</pallas_src>

<mosaic_0001>
module attributes {stable_mosaic.version = 11 : i64} {
  func.func @conv_relu_pool_kernel(%arg0: i32, %arg1: memref<1x27x1024xbf16, #tpu.memory_space<vmem>>, %arg2: memref<16x27xbf16, #tpu.memory_space<vmem>>, %arg3: memref<16x1xf32, #tpu.memory_space<vmem>>, %arg4: memref<1x16x256xf32, #tpu.memory_space<vmem>>) attributes {dimension_semantics = [#tpu.dimension_semantics<parallel>], iteration_bounds = array<i64: 2>, scalar_prefetch = 0 : i64, scratch_operands = 0 : i64, tpu.core_type = #tpu.core_type<tc>, window_params = [{transform_indices = @transform_0, window_bounds = array<i64: 1, 27, 1024>}, {pipeline_mode = #tpu.pipeline_mode<synchronous>, transform_indices = @transform_1, window_bounds = array<i64: 16, 27>}, {pipeline_mode = #tpu.pipeline_mode<synchronous>, transform_indices = @transform_2, window_bounds = array<i64: 16, 1>}, {transform_indices = @transform_3, window_bounds = array<i64: 1, 16, 256>}]} {
    %c0 = arith.constant 0 : index
    %c0_0 = arith.constant 0 : index
    %0 = vector.load %arg2[%c0, %c0_0] : memref<16x27xbf16, #tpu.memory_space<vmem>>, vector<16x27xbf16>
    %c0_1 = arith.constant 0 : index
    %c0_2 = arith.constant 0 : index
    %c0_3 = arith.constant 0 : index
    %1 = vector.load %arg1[%c0_1, %c0_2, %c0_3] : memref<1x27x1024xbf16, #tpu.memory_space<vmem>>, vector<1x27x1024xbf16>
    %2 = vector.shape_cast %1 : vector<1x27x1024xbf16> to vector<27x1024xbf16>
    %cst = arith.constant dense<0.000000e+00> : vector<16x1024xf32>
    %3 = tpu.matmul %0, %2, %cst {dimension_numbers = #tpu.dot_dimension_numbers<[1], [0], [0], [1], [0, 0, 1, 1], [], []>} : vector<16x27xbf16>, vector<27x1024xbf16>, vector<16x1024xf32> -> vector<16x1024xf32>
    %c0_4 = arith.constant 0 : index
    %c0_5 = arith.constant 0 : index
    %4 = vector.load %arg3[%c0_4, %c0_5] : memref<16x1xf32, #tpu.memory_space<vmem>>, vector<16x1xf32>
    %5 = vector.broadcast %4 : vector<16x1xf32> to vector<16x1024xf32>
    %6 = arith.addf %3, %5 : vector<16x1024xf32>
    %cst_6 = arith.constant 0.000000e+00 : f32
    %7 = vector.broadcast %cst_6 : f32 to vector<16x1024xf32>
    %8 = arith.maximumf %6, %7 : vector<16x1024xf32>
    %9 = vector.extract_strided_slice %8 {offsets = [0, 0], sizes = [16, 256], strides = [1, 1]} : vector<16x1024xf32> to vector<16x256xf32>
    %10 = vector.extract_strided_slice %8 {offsets = [0, 256], sizes = [16, 256], strides = [1, 1]} : vector<16x1024xf32> to vector<16x256xf32>
    %11 = arith.maximumf %9, %10 : vector<16x256xf32>
    %12 = vector.extract_strided_slice %8 {offsets = [0, 512], sizes = [16, 256], strides = [1, 1]} : vector<16x1024xf32> to vector<16x256xf32>
    %13 = vector.extract_strided_slice %8 {offsets = [0, 768], sizes = [16, 256], strides = [1, 1]} : vector<16x1024xf32> to vector<16x256xf32>
    %14 = arith.maximumf %12, %13 : vector<16x256xf32>
    %15 = arith.maximumf %11, %14 : vector<16x256xf32>
    %c0_7 = arith.constant 0 : index
    %c0_8 = arith.constant 0 : index
    %c0_9 = arith.constant 0 : index
    %16 = vector.load %arg4[%c0_7, %c0_8, %c0_9] : memref<1x16x256xf32, #tpu.memory_space<vmem>>, vector<1x16x256xf32>
    %17 = vector.shape_cast %16 : vector<1x16x256xf32> to vector<16x256xf32>
    %18 = vector.shape_cast %15 : vector<16x256xf32> to vector<1x16x256xf32>
    tpu.vector_store %arg4[%c0_7, %c0_8, %c0_9], %18 {strides = array<i32>} : memref<1x16x256xf32, #tpu.memory_space<vmem>>, vector<1x16x256xf32>,
    return
  }
  func.func @transform_0(%arg0: i32) -> (i32, i32, i32) {
    %c0_i32 = arith.constant 0 : i32
    %c0_i32_0 = arith.constant 0 : i32
    %c0_i32_1 = arith.constant 0 : i32
    return %arg0, %c0_i32, %c0_i32_0 : i32, i32, i32
  }
  func.func @transform_1(%arg0: i32) -> (i32, i32) {
    %c0_i32 = arith.constant 0 : i32
    %c0_i32_0 = arith.constant 0 : i32
    %c0_i32_1 = arith.constant 0 : i32
    return %c0_i32, %c0_i32_0 : i32, i32
  }
  func.func @transform_2(%arg0: i32) -> (i32, i32) {
    %c0_i32 = arith.constant 0 : i32
    %c0_i32_0 = arith.constant 0 : i32
    %c0_i32_1 = arith.constant 0 : i32
    return %c0_i32, %c0_i32_0 : i32, i32
  }
  func.func @transform_3(%arg0: i32) -> (i32, i32, i32) {
    %c0_i32 = arith.constant 0 : i32
    %c0_i32_0 = arith.constant 0 : i32
    %c0_i32_1 = arith.constant 0 : i32
    return %arg0, %c0_i32, %c0_i32_0 : i32, i32, i32
  }
}

module attributes {stable_mosaic.version = 11 : i64} {
  func.func @fc_kernel(%arg0: i32, %arg1: memref<2x4096xf32, #tpu.memory_space<vmem>>, %arg2: memref<4096x128xf32, #tpu.memory_space<vmem>>, %arg3: memref<1x128xf32, #tpu.memory_space<vmem>>, %arg4: memref<2x128xf32, #tpu.memory_space<vmem>>) attributes {dimension_semantics = [#tpu.dimension_semantics<parallel>], iteration_bounds = array<i64: 1>, scalar_prefetch = 0 : i64, scratch_operands = 0 : i64, tpu.core_type = #tpu.core_type<tc>, window_params = [{transform_indices = @transform_0, window_bounds = array<i64: 2, 4096>}, {pipeline_mode = #tpu.pipeline_mode<synchronous>, transform_indices = @transform_1, window_bounds = array<i64: 4096, 128>}, {pipeline_mode = #tpu.pipeline_mode<synchronous>, transform_indices = @transform_2, window_bounds = array<i64: 1, 128>}, {transform_indices = @transform_3, window_bounds = array<i64: 2, 128>}]} {
    %c0 = arith.constant 0 : index
    %c0_0 = arith.constant 0 : index
    %0 = vector.load %arg1[%c0, %c0_0] : memref<2x4096xf32, #tpu.memory_space<vmem>>, vector<2x4096xf32>
    %c0_1 = arith.constant 0 : index
    %c0_2 = arith.constant 0 : index
    %1 = vector.load %arg2[%c0_1, %c0_2] : memref<4096x128xf32, #tpu.memory_space<vmem>>, vector<4096x128xf32>
    %cst = arith.constant dense<0.000000e+00> : vector<2x128xf32>
    %2 = tpu.matmul %0, %1, %cst {dimension_numbers = #tpu.dot_dimension_numbers<[1], [0], [0], [1], [0, 0, 1, 1], [], []>} : vector<2x4096xf32>, vector<4096x128xf32>, vector<2x128xf32> -> vector<2x128xf32>
    %c0_3 = arith.constant 0 : index
    %c0_4 = arith.constant 0 : index
    %3 = vector.load %arg3[%c0_3, %c0_4] : memref<1x128xf32, #tpu.memory_space<vmem>>, vector<1x128xf32>
    %4 = vector.broadcast %3 : vector<1x128xf32> to vector<2x128xf32>
    %5 = arith.addf %2, %4 : vector<2x128xf32>
    %c0_5 = arith.constant 0 : index
    %c0_6 = arith.constant 0 : index
    %6 = vector.load %arg4[%c0_5, %c0_6] : memref<2x128xf32, #tpu.memory_space<vmem>>, vector<2x128xf32>
    tpu.vector_store %arg4[%c0_5, %c0_6], %5 {strides = array<i32>} : memref<2x128xf32, #tpu.memory_space<vmem>>, vector<2x128xf32>,
    return
  }
  func.func @transform_0(%arg0: i32) -> (i32, i32) {
    %c0_i32 = arith.constant 0 : i32
    %c0_i32_0 = arith.constant 0 : i32
    return %arg0, %c0_i32 : i32, i32
  }
  func.func @transform_1(%arg0: i32) -> (i32, i32) {
    %c0_i32 = arith.constant 0 : i32
    %c0_i32_0 = arith.constant 0 : i32
    %c0_i32_1 = arith.constant 0 : i32
    return %c0_i32, %c0_i32_0 : i32, i32
  }
  func.func @transform_2(%arg0: i32) -> (i32, i32) {
    %c0_i32 = arith.constant 0 : i32
    %c0_i32_0 = arith.constant 0 : i32
    %c0_i32_1 = arith.constant 0 : i32
    return %c0_i32, %c0_i32_0 : i32, i32
  }
  func.func @transform_3(%arg0: i32) -> (i32, i32) {
    %c0_i32 = arith.constant 0 : i32
    %c0_i32_0 = arith.constant 0 : i32
    return %arg0, %c0_i32 : i32, i32
  }
}

</mosaic_0001>

<llo_original>
// kernel: simple_cnn_forward.2
$region0: #{simple_cnn_forward.2}
  #allocation0 [shape = 'u32[]', space=smem, size = 0x4, offset = 0x4, fixed_abs, tag = 'smem constant byte address 0x4 - core index']
  #allocation1 [shape = 'u32[144,128]{1,0:T(1,128)}', space=vmem, size = 0x12000, scoped, tag = 'internal scratch']
  %s0 = inlined_call_operand.vmem [shape: bf16[2,27,1024], index: 0, kind: input, shape index: {}]
  %s1 = inlined_call_operand.vmem [shape: bf16[16,27], index: 1, kind: input, shape index: {}]
  %s2 = inlined_call_operand.vmem [shape: f32[16,1], index: 2, kind: input, shape index: {}]
  %s3 = inlined_call_operand.vmem [shape: f32[2,16,256], index: 3, kind: output, shape index: {}]
  %s4 = sld [smem:[#allocation0]]
  $region45: #{simple_cnn_forward.2} parent=0
    _
  %s6 = ssub.s32 1, %s4
  %s7 = scalar_select 0, %s6, %s4
  loop: start=0, step=1, limit=4
  $region2: #{simple_cnn_forward.2} parent=0 // loop_pre_header
    _
  $region3: #{simple_cnn_forward.2} parent=0 // loop_header
    %s9 = sphi 0, %s13
    %p10 = scmp.ge.s32.totalorder %s9, 4
    %s19 = sphi 0, %s21
    %s22 = sphi 0, %s19
    %s23 = sphi 0, %s22
    %s39 = sphi 0, %s23
    %s43 = sphi 0, %s43
    %s45 = sphi 0, %s43
    %s46 = sphi 0, %s45
    %s60 = sphi 0, %s46
    %s64 = sphi 0, %s64
    %s66 = sphi 0, %s64
    %s67 = sphi 0, %s66
    %s81 = sphi 0, %s67
    %s87 = sphi 0, %s89
    %s90 = sphi 0, %s87
    %s91 = sphi 0, %s90
    %s107 = sphi 0, %s91
  $region4: #{simple_cnn_forward.2} parent=0 // loop_header_branch
    %12 = sbr.rel (%p10) target = $region8
  $region5: #{simple_cnn_forward.2} parent=0 // loop_body
    %s14 = ssub.s32 %s9, 1
    %s15 = ssub.s32 %s9, 2
    %s16 = sadd.s32 %s9, 1
    %s17 = ssub.s32 %s9, %s16
    %p18 = scmp.eq.s32.totalorder %s17, 0
    %s20 = sadd.s32 %s19, 1
    %s21 = scalar_select %p18, %s19, %s20
    %p24 = pneg %p18
    %p25 = scmp.eq.s32.totalorder %s9, 1
    %p26 = por %p24, %p25
    %p27 = scmp.ne.s32.totalorder %s19, %s22
    %p28 = scmp.eq.s32.totalorder %s9, 0
    %p29 = por %p27, %p28
    %p30 = scmp.ne.s32.totalorder %s19, %s22
    %p31 = scmp.eq.s32.totalorder %s14, 1
    %p32 = por %p30, %p31
    %p33 = scmp.ne.s32.totalorder %s22, %s23
    %p34 = scmp.eq.s32.totalorder %s14, 0
    %p35 = por %p33, %p34
    %p36 = scmp.ne.s32.totalorder %s22, %s23
    %p37 = scmp.eq.s32.totalorder %s15, 1
    %p38 = por %p36, %p37
    %p40 = scmp.ne.s32.totalorder %s23, %s39
    %p41 = scmp.eq.s32.totalorder %s15, 0
    %p42 = por %p40, %p41
    %s44 = sadd.s32 %s43, 1
    %p47 = scmp.eq.s32.totalorder %s9, 1
    %p48 = scmp.ne.s32.totalorder %s43, %s45
    %p49 = scmp.eq.s32.totalorder %s9, 0
    %p50 = por %p48, %p49
    %p51 = scmp.ne.s32.totalorder %s43, %s45
    %p52 = scmp.eq.s32.totalorder %s14, 1
    %p53 = por %p51, %p52
    %p54 = scmp.ne.s32.totalorder %s45, %s46
    %p55 = scmp.eq.s32.totalorder %s14, 0
    %p56 = por %p54, %p55
    %p57 = scmp.ne.s32.totalorder %s45, %s46
    %p58 = scmp.eq.s32.totalorder %s15, 1
    %p59 = por %p57, %p58
    %p61 = scmp.ne.s32.totalorder %s46, %s60
    %p62 = scmp.eq.s32.totalorder %s15, 0
    %p63 = por %p61, %p62
    %s65 = sadd.s32 %s64, 1
    %p68 = scmp.eq.s32.totalorder %s9, 1
    %p69 = scmp.ne.s32.totalorder %s64, %s66
    %p70 = scmp.eq.s32.totalorder %s9, 0
    %p71 = por %p69, %p70
    %p72 = scmp.ne.s32.totalorder %s64, %s66
    %p73 = scmp.eq.s32.totalorder %s14, 1
    %p74 = por %p72, %p73
    %p75 = scmp.ne.s32.totalorder %s66, %s67
    %p76 = scmp.eq.s32.totalorder %s14, 0
    %p77 = por %p75, %p76
    %p78 = scmp.ne.s32.totalorder %s66, %s67
    %p79 = scmp.eq.s32.totalorder %s15, 1
    %p80 = por %p78, %p79
    %p82 = scmp.ne.s32.totalorder %s67, %s81
    %p83 = scmp.eq.s32.totalorder %s15, 0
    %p84 = por %p82, %p83
    %s85 = ssub.s32 %s9, %s16
    %p86 = scmp.eq.s32.totalorder %s85, 0
    %s88 = sadd.s32 %s87, 1
    %s89 = scalar_select %p86, %s87, %s88
    %p92 = pneg %p86
    %p93 = scmp.eq.s32.totalorder %s9, 1
    %p94 = por %p92, %p93
    %p95 = scmp.ne.s32.totalorder %s87, %s90
    %p96 = scmp.eq.s32.totalorder %s9, 0
    %p97 = por %p95, %p96
    %p98 = scmp.ne.s32.totalorder %s87, %s90
    %p99 = scmp.eq.s32.totalorder %s14, 1
    %p100 = por %p98, %p99
    %p101 = scmp.ne.s32.totalorder %s90, %s91
    %p102 = scmp.eq.s32.totalorder %s14, 0
    %p103 = por %p101, %p102
    %p104 = scmp.ne.s32.totalorder %s90, %s91
    %p105 = scmp.eq.s32.totalorder %s15, 1
    %p106 = por %p104, %p105
    %p108 = scmp.ne.s32.totalorder %s91, %s107
    %p109 = scmp.eq.s32.totalorder %s15, 0
    %p110 = por %p108, %p109
    %p111 = scmp.le.s32.totalorder 1, %s9
    %p112 = scmp.lt.s32.totalorder %s9, 3
    %p113 = pnand %p111, %p112
    %p114 = pneg %p113
    // Predicated region
    $region9: #{simple_cnn_forward.2} parent=5 // pred_check
      _
    $region10: #{simple_cnn_forward.2} parent=5 // pred_check_branch
      %116 = sbr.rel (%p113) target = $region12
    $region11: #{simple_cnn_forward.2} parent=5 // pred_region
      %s117 = ssub.s32 %s9, 1
      // Predicated region
      $region13: #{simple_cnn_forward.2} parent=11 // pred_check
        %p118 = pneg %p56
      $region14: #{simple_cnn_forward.2} parent=11 // pred_check_branch
        %120 = sbr.rel (%p118) target = $region16
      $region15: #{simple_cnn_forward.2} parent=11 // pred_region
        _
      $region16: #{simple_cnn_forward.2} parent=11 // pred_fallthru
        _
      // Predicated region
      $region17: #{simple_cnn_forward.2} parent=11 // pred_check
        %p121 = pneg %p77
      $region18: #{simple_cnn_forward.2} parent=11 // pred_check_branch
        %123 = sbr.rel (%p121) target = $region20
      $region19: #{simple_cnn_forward.2} parent=11 // pred_region
        _
      $region20: #{simple_cnn_forward.2} parent=11 // pred_fallthru
        _
    $region12: #{simple_cnn_forward.2} parent=5 // pred_fallthru
      _
    %p124 = scmp.lt.s32.totalorder %s9, 2
    // Predicated region
    $region21: #{simple_cnn_forward.2} parent=5 // pred_check
      %p125 = pneg %p124
    $region22: #{simple_cnn_forward.2} parent=5 // pred_check_branch
      %127 = sbr.rel (%p125) target = $region24
    $region23: #{simple_cnn_forward.2} parent=5 // pred_region
      // Predicated region
      $region25: #{simple_cnn_forward.2} parent=23 // pred_check
        %p128 = pneg %p29
      $region26: #{simple_cnn_forward.2} parent=23 // pred_check_branch
        %130 = sbr.rel (%p128) target = $region28
      $region27: #{simple_cnn_forward.2} parent=23 // pred_region
        %p131 = scmp.lt.s32.totalorder %s9, 1
        %s132 = scalar_select %p131, %s9, 1
        %s133 = smul.addr %s132, 32
        %s134 = smul.addr %s133, 4
        %s135 = scalar_lea.vmem %s0, %s134
      $region28: #{simple_cnn_forward.2} parent=23 // pred_fallthru
        _
    $region24: #{simple_cnn_forward.2} parent=5 // pred_fallthru
      _
    %p136 = scmp.le.s32.totalorder 1, %s9
    %p137 = scmp.lt.s32.totalorder %s9, 3
    %p138 = pnand %p136, %p137
    %p139 = pneg %p138
    // Predicated region
    $region29: #{simple_cnn_forward.2} parent=5 // pred_check
      _
    $region30: #{simple_cnn_forward.2} parent=5 // pred_check_branch
      %141 = sbr.rel (%p138) target = $region32
    $region31: #{simple_cnn_forward.2} parent=5 // pred_region
      %s142 = ssub.s32 %s9, 1
      %p143 = scmp.lt.s32.totalorder %s14, 1
      %s144 = scalar_select %p143, %s14, 1
      %s145 = smul.addr %s144, 32
      %s146 = smul.addr %s145, 4
      %s147 = scalar_lea.vmem %s0, %s146
      %p148 = pneg %p35
      %p149 = pneg %p32
      %p150 = pneg %p56
      %p151 = pneg %p53
      %p152 = pneg %p77
      %p153 = pneg %p74
      %p154 = pneg %p103
      %p155 = pneg %p100
      %p156 = scmp.lt.s32.totalorder %s14, 1
      %s157 = scalar_select %p156, %s14, 1
      %s158 = smul.addr %s157, 4
      %s159 = smul.addr %s158, 8
      %s160 = scalar_lea.vmem %s3, %s159
      %p161 = scmp.lt.s32.totalorder %s14, 1
      %s162 = scalar_select %p161, %s14, 1
      %s163 = smul.addr %s162, 32
      %s164 = smul.addr %s163, 4
      %s165 = scalar_lea.vmem %s0, %s164
      %p166 = scmp.lt.s32.totalorder %s14, 1
      %s167 = scalar_select %p166, %s14, 1
      %s168 = smul.addr %s167, 4
      %s169 = smul.addr %s168, 8
      %s170 = scalar_lea.vmem %s3, %s169
      %v172 = vld [vmem:[%s1] sm:$0xf]
      %v173 = vld [vmem:[%s1 + $0x4] sm:$0xf]
      %v174 = vld [vmem:[%s165] sm:$0xff]
      %v175 = vld [vmem:[%s165 + $0x8] sm:$0xff]
      %v176 = vld [vmem:[%s165 + $0x10] sm:$0xff]
      %v177 = vld [vmem:[%s165 + $0x18] sm:$0xff]
      %v178 = vld [vmem:[%s165 + $0x20] sm:$0xff]
      %v179 = vld [vmem:[%s165 + $0x28] sm:$0xff]
      %v180 = vld [vmem:[%s165 + $0x30] sm:$0xff]
      %v181 = vld [vmem:[%s165 + $0x38] sm:$0xff]
      %v182 = vld [vmem:[%s165 + $0x40] sm:$0xff]
      %v183 = vld [vmem:[%s165 + $0x48] sm:$0xff]
      %v184 = vld [vmem:[%s165 + $0x50] sm:$0xff]
      %v185 = vld [vmem:[%s165 + $0x58] sm:$0xff]
      %v186 = vld [vmem:[%s165 + $0x60] sm:$0x33]
      %v187 = vld [vmem:[%s165 + $0x68] sm:$0x33]
      %v188 = vld [vmem:[%s165 + $0x70] sm:$0x33]
      %v189 = vld [vmem:[%s165 + $0x78] sm:$0x33]
      %v190 = vld [vmem:[%s2] sm:$0xff]
      %v191 = vld [vmem:[%s2 + $0x8] sm:$0xff]
      %193 = vset.pattern.permute.xlu0 0
      %194 = vperm.xlu0 %193, %v190
      %v195 = vpop.permute.xlu0 %194
      %198 = vset.pattern.permute.xlu0 0
      %199 = vperm.xlu0 %198, %v191
      %v200 = vpop.permute.xlu0 %199
      %v204 = vunpack.c.l.b16 %v172
      %v205 = vunpack.c.l.b16 %v173
      %v206 = vpack.c.b16 %v205, %v204
      %v223 = vunpack.c.l.b16 %v174
      %v224 = vunpack.c.h.b16 %v174
      %v225 = vunpack.c.l.b16 %v175
      %v226 = vunpack.c.h.b16 %v175
      %v227 = vunpack.c.l.b16 %v176
      %v228 = vunpack.c.h.b16 %v176
      %v229 = vunpack.c.l.b16 %v177
      %v230 = vunpack.c.h.b16 %v177
      %v231 = vunpack.c.l.b16 %v178
      %v232 = vunpack.c.h.b16 %v178
      %v233 = vunpack.c.l.b16 %v179
      %v234 = vunpack.c.h.b16 %v179
      %v235 = vunpack.c.l.b16 %v180
      %v236 = vunpack.c.h.b16 %v180
      %v237 = vunpack.c.l.b16 %v181
      %v238 = vunpack.c.h.b16 %v181
      %v239 = vunpack.c.l.b16 %v182
      %v240 = vunpack.c.h.b16 %v182
      %v241 = vunpack.c.l.b16 %v183
      %v242 = vunpack.c.h.b16 %v183
      %v243 = vunpack.c.l.b16 %v184
      %v244 = vunpack.c.h.b16 %v184
      %v245 = vunpack.c.l.b16 %v185
      %v246 = vunpack.c.h.b16 %v185
      %v247 = vunpack.c.l.b16 %v186
      %v248 = vunpack.c.h.b16 %v186
      %v249 = vunpack.c.l.b16 %v187
      %v250 = vunpack.c.h.b16 %v187
      %v251 = vunpack.c.l.b16 %v188
      %v252 = vunpack.c.h.b16 %v188
      %v253 = vunpack.c.l.b16 %v189
      %v254 = vunpack.c.h.b16 %v189
      %v255 = vpack.c.b16 %v231, %v223
      %v256 = vpack.c.b16 %v232, %v224
      %v257 = vpack.c.b16 %v233, %v225
      %v258 = vpack.c.b16 %v234, %v226
      %v259 = vpack.c.b16 %v235, %v227
      %v260 = vpack.c.b16 %v236, %v228
      %v261 = vpack.c.b16 %v237, %v229
      %v262 = vpack.c.b16 %v238, %v230
      %v263 = vpack.c.b16 %v247, %v239
      %v264 = vpack.c.b16 %v248, %v240
      %v265 = vpack.c.b16 %v249, %v241
      %v266 = vpack.c.b16 %v250, %v242
      %v267 = vpack.c.b16 %v251, %v243
      %v268 = vpack.c.b16 %v252, %v244
      %v269 = vpack.c.b16 %v253, %v245
      %v270 = vpack.c.b16 %v254, %v246
      %vm279 = vcmask 220160
      %v281 = vsel %vm279, %v206, 0
      %vm283 = vcmask 1044480
      %vm284 = vcmask 1045504
      %v285 = vsel %vm283, 4294967295, 65535
      %v286 = vsel %vm284, %v285, 0
      %v288 = vand.u32 %v263, %v286
      %v291 = vand.u32 %v264, %v286
      %v294 = vand.u32 %v265, %v286
      %v297 = vand.u32 %v266, %v286
      %v300 = vand.u32 %v267, %v286
      %v303 = vand.u32 %v268, %v286
      %v306 = vand.u32 %v269, %v286
      %v309 = vand.u32 %v270, %v286
      %311 = vmatprep.subr.bf16.mxu0 0
      %312 = vmatpush1.bf16.msra.mxu0 0
      %313 = vmatprep.subr.bf16.mxu0 0
      %314 = vmatpush1.bf16.msra.mxu0 0
      %315 = vmatprep.subr.bf16.mxu0 0
      %316 = vmatpush1.bf16.msra.mxu0 0
      %317 = vmatprep.subr.bf16.mxu0 0
      %318 = vmatpush1.bf16.msra.mxu0 0
      %319 = vmatprep.subr.bf16.mxu0 0
      %320 = vmatpush1.bf16.msra.mxu0 0
      %321 = vmatprep.subr.bf16.mxu0 0
      %322 = vmatpush1.bf16.msra.mxu0 0
      %323 = vmatprep.subr.bf16.mxu0 %v291
      %324 = vmatpush1.bf16.msra.mxu0 %v288
      %325 = vmatprep.subr.bf16.mxu0 %v256
      %326 = vmatpush1.bf16.msra.mxu0 %v255
      %327 = vmatprep.subr.bf16.mxu0 0
      %328 = vmatpush2.bf16.msra.mxu0 0
      %329 = vmatprep.subr.bf16.mxu0 0
      %330 = vmatpush2.bf16.msra.mxu0 0
      %331 = vmatprep.subr.bf16.mxu0 0
      %332 = vmatpush2.bf16.msra.mxu0 0
      %333 = vmatprep.subr.bf16.mxu0 0
      %334 = vmatpush2.bf16.msra.mxu0 0
      %335 = vmatprep.subr.bf16.mxu0 0
      %336 = vmatpush2.bf16.msra.mxu0 0
      %337 = vmatprep.subr.bf16.mxu0 0
      %338 = vmatpush2.bf16.msra.mxu0 0
      %339 = vmatprep.subr.bf16.mxu0 0
      %340 = vmatpush2.bf16.msra.mxu0 0
      %341 = vmatprep.subr.bf16.mxu0 0
      %342 = vmatpush2.bf16.msra.mxu0 0
      %343 = vmatprep.mubr.bf16.mxu0 0
      %344 = vmatmul.mubr.bf16.gmra.mxu0 %v281
      %v345 = vpop.f32.mrf.mxu0
      %v346 = vadd.f32 %v195, %v345
      %v347 = vpop.f32.mrf.mxu0
      %v348 = vadd.f32 %v195, %v347
      %v349 = vpop.f32.mrf.mxu0
      %v350 = vadd.f32 %v200, %v349
      %v351 = vpop.f32.mrf.mxu0
      %v352 = vadd.f32 %v200, %v351
      %353 = vdwg.mxu0
      %354 = vmatprep.subr.bf16.mxu0 0
      %355 = vmatpush1.bf16.msra.mxu0 0
      %356 = vmatprep.subr.bf16.mxu0 0
      %357 = vmatpush1.bf16.msra.mxu0 0
      %358 = vmatprep.subr.bf16.mxu0 0
      %359 = vmatpush1.bf16.msra.mxu0 0
      %360 = vmatprep.subr.bf16.mxu0 0
      %361 = vmatpush1.bf16.msra.mxu0 0
      %362 = vmatprep.subr.bf16.mxu0 0
      %363 = vmatpush1.bf16.msra.mxu0 0
      %364 = vmatprep.subr.bf16.mxu0 0
      %365 = vmatpush1.bf16.msra.mxu0 0
      %366 = vmatprep.subr.bf16.mxu0 %v297
      %367 = vmatpush1.bf16.msra.mxu0 %v294
      %368 = vmatprep.subr.bf16.mxu0 %v258
      %369 = vmatpush1.bf16.msra.mxu0 %v257
      %370 = vmatprep.subr.bf16.mxu0 0
      %371 = vmatpush2.bf16.msra.mxu0 0
      %372 = vmatprep.subr.bf16.mxu0 0
      %373 = vmatpush2.bf16.msra.mxu0 0
      %374 = vmatprep.subr.bf16.mxu0 0
      %375 = vmatpush2.bf16.msra.mxu0 0
      %376 = vmatprep.subr.bf16.mxu0 0
      %377 = vmatpush2.bf16.msra.mxu0 0
      %378 = vmatprep.subr.bf16.mxu0 0
      %379 = vmatpush2.bf16.msra.mxu0 0
      %380 = vmatprep.subr.bf16.mxu0 0
      %381 = vmatpush2.bf16.msra.mxu0 0
      %382 = vmatprep.subr.bf16.mxu0 0
      %383 = vmatpush2.bf16.msra.mxu0 0
      %384 = vmatprep.subr.bf16.mxu0 0
      %385 = vmatpush2.bf16.msra.mxu0 0
      %386 = vmatprep.mubr.bf16.mxu0 0
      %387 = vmatmul.mubr.bf16.gmra.mxu0 %v281
      %v388 = vpop.f32.mrf.mxu0
      %v389 = vadd.f32 %v195, %v388
      %v390 = vpop.f32.mrf.mxu0
      %v391 = vadd.f32 %v195, %v390
      %v392 = vpop.f32.mrf.mxu0
      %v393 = vadd.f32 %v200, %v392
      %v394 = vpop.f32.mrf.mxu0
      %v395 = vadd.f32 %v200, %v394
      %396 = vdwg.mxu0
      %397 = vmatprep.subr.bf16.mxu0 0
      %398 = vmatpush1.bf16.msra.mxu0 0
      %399 = vmatprep.subr.bf16.mxu0 0
      %400 = vmatpush1.bf16.msra.mxu0 0
      %401 = vmatprep.subr.bf16.mxu0 0
      %402 = vmatpush1.bf16.msra.mxu0 0
      %403 = vmatprep.subr.bf16.mxu0 0
      %404 = vmatpush1.bf16.msra.mxu0 0
      %405 = vmatprep.subr.bf16.mxu0 0
      %406 = vmatpush1.bf16.msra.mxu0 0
      %407 = vmatprep.subr.bf16.mxu0 0
      %408 = vmatpush1.bf16.msra.mxu0 0
      %409 = vmatprep.subr.bf16.mxu0 %v303
      %410 = vmatpush1.bf16.msra.mxu0 %v300
      %411 = vmatprep.subr.bf16.mxu0 %v260
      %412 = vmatpush1.bf16.msra.mxu0 %v259
      %413 = vmatprep.subr.bf16.mxu0 0
      %414 = vmatpush2.bf16.msra.mxu0 0
      %415 = vmatprep.subr.bf16.mxu0 0
      %416 = vmatpush2.bf16.msra.mxu0 0
      %417 = vmatprep.subr.bf16.mxu0 0
      %418 = vmatpush2.bf16.msra.mxu0 0
      %419 = vmatprep.subr.bf16.mxu0 0
      %420 = vmatpush2.bf16.msra.mxu0 0
      %421 = vmatprep.subr.bf16.mxu0 0
      %422 = vmatpush2.bf16.msra.mxu0 0
      %423 = vmatprep.subr.bf16.mxu0 0
      %424 = vmatpush2.bf16.msra.mxu0 0
      %425 = vmatprep.subr.bf16.mxu0 0
      %426 = vmatpush2.bf16.msra.mxu0 0
      %427 = vmatprep.subr.bf16.mxu0 0
      %428 = vmatpush2.bf16.msra.mxu0 0
      %429 = vmatprep.mubr.bf16.mxu0 0
      %430 = vmatmul.mubr.bf16.gmra.mxu0 %v281
      %v431 = vpop.f32.mrf.mxu0
      %v432 = vadd.f32 %v195, %v431
      %v433 = vpop.f32.mrf.mxu0
      %v434 = vadd.f32 %v195, %v433
      %v435 = vpop.f32.mrf.mxu0
      %v436 = vadd.f32 %v200, %v435
      %v437 = vpop.f32.mrf.mxu0
      %v438 = vadd.f32 %v200, %v437
      %439 = vdwg.mxu0
      %440 = vmatprep.subr.bf16.mxu0 0
      %441 = vmatpush1.bf16.msra.mxu0 0
      %442 = vmatprep.subr.bf16.mxu0 0
      %443 = vmatpush1.bf16.msra.mxu0 0
      %444 = vmatprep.subr.bf16.mxu0 0
      %445 = vmatpush1.bf16.msra.mxu0 0
      %446 = vmatprep.subr.bf16.mxu0 0
      %447 = vmatpush1.bf16.msra.mxu0 0
      %448 = vmatprep.subr.bf16.mxu0 0
      %449 = vmatpush1.bf16.msra.mxu0 0
      %450 = vmatprep.subr.bf16.mxu0 0
      %451 = vmatpush1.bf16.msra.mxu0 0
      %452 = vmatprep.subr.bf16.mxu0 %v309
      %453 = vmatpush1.bf16.msra.mxu0 %v306
      %454 = vmatprep.subr.bf16.mxu0 %v262
      %455 = vmatpush1.bf16.msra.mxu0 %v261
      %456 = vmatprep.subr.bf16.mxu0 0
      %457 = vmatpush2.bf16.msra.mxu0 0
      %458 = vmatprep.subr.bf16.mxu0 0
      %459 = vmatpush2.bf16.msra.mxu0 0
      %460 = vmatprep.subr.bf16.mxu0 0
      %461 = vmatpush2.bf16.msra.mxu0 0
      %462 = vmatprep.subr.bf16.mxu0 0
      %463 = vmatpush2.bf16.msra.mxu0 0
      %464 = vmatprep.subr.bf16.mxu0 0
      %465 = vmatpush2.bf16.msra.mxu0 0
      %466 = vmatprep.subr.bf16.mxu0 0
      %467 = vmatpush2.bf16.msra.mxu0 0
      %468 = vmatprep.subr.bf16.mxu0 0
      %469 = vmatpush2.bf16.msra.mxu0 0
      %470 = vmatprep.subr.bf16.mxu0 0
      %471 = vmatpush2.bf16.msra.mxu0 0
      %472 = vmatprep.mubr.bf16.mxu0 0
      %473 = vmatmul.mubr.bf16.gmra.mxu0 %v281
      %v474 = vpop.f32.mrf.mxu0
      %v475 = vadd.f32 %v195, %v474
      %v476 = vpop.f32.mrf.mxu0
      %v477 = vadd.f32 %v195, %v476
      %v478 = vpop.f32.mrf.mxu0
      %v479 = vadd.f32 %v200, %v478
      %v480 = vpop.f32.mrf.mxu0
      %v481 = vadd.f32 %v200, %v480
      %482 = vdwg.mxu0
      %v483 = vmax.f32 %v346, 0.0
      %v484 = vmax.f32 %v348, 0.0
      %v485 = vmax.f32 %v389, 0.0
      %v486 = vmax.f32 %v391, 0.0
      %v487 = vmax.f32 %v432, 0.0
      %v488 = vmax.f32 %v434, 0.0
      %v489 = vmax.f32 %v475, 0.0
      %v490 = vmax.f32 %v477, 0.0
      %v491 = vmax.f32 %v350, 0.0
      %v492 = vmax.f32 %v352, 0.0
      %v493 = vmax.f32 %v393, 0.0
      %v494 = vmax.f32 %v395, 0.0
      %v495 = vmax.f32 %v436, 0.0
      %v496 = vmax.f32 %v438, 0.0
      %v497 = vmax.f32 %v479, 0.0
      %v498 = vmax.f32 %v481, 0.0
      %v499 = vmax.f32 %v483, %v485
      %v500 = vmax.f32 %v484, %v486
      %v501 = vmax.f32 %v491, %v493
      %v502 = vmax.f32 %v492, %v494
      %v503 = vmax.f32 %v487, %v489
      %v504 = vmax.f32 %v488, %v490
      %v505 = vmax.f32 %v495, %v497
      %v506 = vmax.f32 %v496, %v498
      %v507 = vmax.f32 %v499, %v503
      %v508 = vmax.f32 %v500, %v504
      %v509 = vmax.f32 %v501, %v505
      %v510 = vmax.f32 %v502, %v506
      %511 = vst [vmem:[%s170] sm:$0xff] %v507
      %512 = vst [vmem:[%s170 + $0x8] sm:$0xff] %v508
      %513 = vst [vmem:[%s170 + $0x10] sm:$0xff] %v509
      %514 = vst [vmem:[%s170 + $0x18] sm:$0xff] %v510
      %p515 = scmp.lt.s32.totalorder %s14, 1
      %s516 = scalar_select %p515, %s14, 1
      %s517 = smul.addr %s516, 4
      %s518 = smul.addr %s517, 8
      %s519 = scalar_lea.vmem %s3, %s518
      // Predicated region
      $region33: #{simple_cnn_forward.2} parent=31 // pred_check
        %p520 = pneg %p100
      $region34: #{simple_cnn_forward.2} parent=31 // pred_check_branch
        %522 = sbr.rel (%p520) target = $region36
      $region35: #{simple_cnn_forward.2} parent=31 // pred_region
        _
      $region36: #{simple_cnn_forward.2} parent=31 // pred_fallthru
        _
    $region32: #{simple_cnn_forward.2} parent=5 // pred_fallthru
      _
    %p523 = scmp.le.s32.totalorder 2, %s9
    // Predicated region
    $region37: #{simple_cnn_forward.2} parent=5 // pred_check
      %p524 = pneg %p523
    $region38: #{simple_cnn_forward.2} parent=5 // pred_check_branch
      %526 = sbr.rel (%p524) target = $region40
    $region39: #{simple_cnn_forward.2} parent=5 // pred_region
      %s527 = ssub.s32 %s9, 2
      // Predicated region
      $region41: #{simple_cnn_forward.2} parent=39 // pred_check
        %p528 = pneg %p106
      $region42: #{simple_cnn_forward.2} parent=39 // pred_check_branch
        %530 = sbr.rel (%p528) target = $region44
      $region43: #{simple_cnn_forward.2} parent=39 // pred_region
        %p531 = scmp.lt.s32.totalorder %s15, 1
        %s532 = scalar_select %p531, %s15, 1
        %s533 = smul.addr %s532, 4
        %s534 = smul.addr %s533, 8
        %s535 = scalar_lea.vmem %s3, %s534
      $region44: #{simple_cnn_forward.2} parent=39 // pred_fallthru
        _
    $region40: #{simple_cnn_forward.2} parent=5 // pred_fallthru
      _
  $region6: #{simple_cnn_forward.2} parent=0 // loop_footer
    %s13 = sadd.s32 1, %s9
  $region7: #{simple_cnn_forward.2} parent=0 // loop_footer_branch
    %8 = sbr.rel target = $region3
  $region8: #{simple_cnn_forward.2} parent=0 // loop_exit
    _

// kernel: simple_cnn_forward.3
$region0: #{simple_cnn_forward.3}
  #allocation0 [shape = 'u32[]', space=smem, size = 0x4, offset = 0x4, fixed_abs, tag = 'smem constant byte address 0x4 - core index']
  #allocation1 [shape = 'u32[144,128]{1,0:T(1,128)}', space=vmem, size = 0x12000, scoped, tag = 'internal scratch']
  %s0 = inlined_call_operand.vmem [shape: f32[2,4096], index: 0, kind: input, shape index: {}]
  %s1 = inlined_call_operand.vmem [shape: f32[4096,128], index: 1, kind: input, shape index: {}]
  %s2 = inlined_call_operand.vmem [shape: f32[1,128], index: 2, kind: input, shape index: {}]
  %s3 = inlined_call_operand.hbm [shape: f32[2,128], index: 3, kind: output, shape index: {}]
  %s4 = sld [smem:[#allocation0]]
  $region22: #{simple_cnn_forward.3} parent=0
    _
  %s6 = ssub.s32 1, %s4
  %s7 = scalar_select 0, %s6, %s4
  $region1: #{simple_cnn_forward.3} parent=0
    #allocation2 [shape = 'u8[1024]{0}', space=vmem, size = 0x400, scoped, tag = 'output window, operand 0, single buffered']
    #allocation3 [shape = 's32[1]{0}', space=sflag, size = 0x4, scoped, tag = 'scoped memory for simple_cnn_forward.3']
    %8 = vsyncpa [#allocation3], 0
    // Predicated region
    $region2: #{simple_cnn_forward.3} parent=1 // pred_check
      _
    $region3: #{simple_cnn_forward.3} parent=1 // pred_check_branch
      %10 = sbr.rel (0) target = $region5
    $region4: #{simple_cnn_forward.3} parent=1 // pred_region
      _
    $region5: #{simple_cnn_forward.3} parent=1 // pred_fallthru
      _
    // Predicated region
    $region6: #{simple_cnn_forward.3} parent=1 // pred_check
      _
    $region7: #{simple_cnn_forward.3} parent=1 // pred_check_branch
      %12 = sbr.rel (0) target = $region9
    $region8: #{simple_cnn_forward.3} parent=1 // pred_region
      _
    $region9: #{simple_cnn_forward.3} parent=1 // pred_fallthru
      _
    // Predicated region
    $region10: #{simple_cnn_forward.3} parent=1 // pred_check
      _
    $region11: #{simple_cnn_forward.3} parent=1 // pred_check_branch
      %14 = sbr.rel (0) target = $region13
    $region12: #{simple_cnn_forward.3} parent=1 // pred_region
      _
    $region13: #{simple_cnn_forward.3} parent=1 // pred_fallthru
      _
    %v15 = vld [vmem:[%s0] sm:$0xff]
    %v16 = vld [vmem:[%s0 + $0x8] sm:$0xff]
    %v17 = vld [vmem:[%s0 + $0x10] sm:$0xff]
    %v18 = vld [vmem:[%s0 + $0x18] sm:$0xff]
    %v19 = vld [vmem:[%s0 + $0x20] sm:$0xff]
    %v20 = vld [vmem:[%s0 + $0x28] sm:$0xff]
    %v21 = vld [vmem:[%s0 + $0x30] sm:$0xff]
    %v22 = vld [vmem:[%s0 + $0x38] sm:$0xff]
    %v23 = vld [vmem:[%s1] sm:$0xff]
    %v24 = vld [vmem:[%s1 + $0x8] sm:$0xff]
    %v25 = vld [vmem:[%s1 + $0x10] sm:$0xff]
    %v26 = vld [vmem:[%s1 + $0x18] sm:$0xff]
    %v27 = vld [vmem:[%s1 + $0x20] sm:$0xff]
    %v28 = vld [vmem:[%s1 + $0x28] sm:$0xff]
    %v29 = vld [vmem:[%s1 + $0x30] sm:$0xff]
    %v30 = vld [vmem:[%s1 + $0x38] sm:$0xff]
    %v31 = vld [vmem:[%s1 + $0x40] sm:$0xff]
    %v32 = vld [vmem:[%s1 + $0x48] sm:$0xff]
    %v33 = vld [vmem:[%s1 + $0x50] sm:$0xff]
    %v34 = vld [vmem:[%s1 + $0x58] sm:$0xff]
    %v35 = vld [vmem:[%s1 + $0x60] sm:$0xff]
    %v36 = vld [vmem:[%s1 + $0x68] sm:$0xff]
    %v37 = vld [vmem:[%s1 + $0x70] sm:$0xff]
    %v38 = vld [vmem:[%s1 + $0x78] sm:$0xff]
    %v39 = vld [vmem:[%s1 + $0x80] sm:$0xff]
    %v40 = vld [vmem:[%s1 + $0x88] sm:$0xff]
    %v41 = vld [vmem:[%s1 + $0x90] sm:$0xff]
    %v42 = vld [vmem:[%s1 + $0x98] sm:$0xff]
    %v43 = vld [vmem:[%s1 + $0xa0] sm:$0xff]
    %v44 = vld [vmem:[%s1 + $0xa8] sm:$0xff]
    %v45 = vld [vmem:[%s1 + $0xb0] sm:$0xff]
    %v46 = vld [vmem:[%s1 + $0xb8] sm:$0xff]
    %v47 = vld [vmem:[%s1 + $0xc0] sm:$0xff]
    %v48 = vld [vmem:[%s1 + $0xc8] sm:$0xff]
    %v49 = vld [vmem:[%s1 + $0xd0] sm:$0xff]
    %v50 = vld [vmem:[%s1 + $0xd8] sm:$0xff]
    %v51 = vld [vmem:[%s1 + $0xe0] sm:$0xff]
    %v52 = vld [vmem:[%s1 + $0xe8] sm:$0xff]
    %v53 = vld [vmem:[%s1 + $0xf0] sm:$0xff]
    %v54 = vld [vmem:[%s1 + $0xf8] sm:$0xff]
    %v55 = vld [vmem:[%s1 + $0x100] sm:$0xff]
    %v56 = vld [vmem:[%s1 + $0x108] sm:$0xff]
    %v57 = vld [vmem:[%s1 + $0x110] sm:$0xff]
    %v58 = vld [vmem:[%s1 + $0x118] sm:$0xff]
    %v59 = vld [vmem:[%s1 + $0x120] sm:$0xff]
    %v60 = vld [vmem:[%s1 + $0x128] sm:$0xff]
    %v61 = vld [vmem:[%s1 + $0x130] sm:$0xff]
    %v62 = vld [vmem:[%s1 + $0x138] sm:$0xff]
    %v63 = vld [vmem:[%s1 + $0x140] sm:$0xff]
    %v64 = vld [vmem:[%s1 + $0x148] sm:$0xff]
    %v65 = vld [vmem:[%s1 + $0x150] sm:$0xff]
    %v66 = vld [vmem:[%s1 + $0x158] sm:$0xff]
    %v67 = vld [vmem:[%s1 + $0x160] sm:$0xff]
    %v68 = vld [vmem:[%s1 + $0x168] sm:$0xff]
    %v69 = vld [vmem:[%s1 + $0x170] sm:$0xff]
    %v70 = vld [vmem:[%s1 + $0x178] sm:$0xff]
    %v71 = vld [vmem:[%s1 + $0x180] sm:$0xff]
    %v72 = vld [vmem:[%s1 + $0x188] sm:$0xff]
    %v73 = vld [vmem:[%s1 + $0x190] sm:$0xff]
    %v74 = vld [vmem:[%s1 + $0x198] sm:$0xff]
    %v75 = vld [vmem:[%s1 + $0x1a0] sm:$0xff]
    %v76 = vld [vmem:[%s1 + $0x1a8] sm:$0xff]
    %v77 = vld [vmem:[%s1 + $0x1b0] sm:$0xff]
    %v78 = vld [vmem:[%s1 + $0x1b8] sm:$0xff]
    %v79 = vld [vmem:[%s1 + $0x1c0] sm:$0xff]
    %v80 = vld [vmem:[%s1 + $0x1c8] sm:$0xff]
    %v81 = vld [vmem:[%s1 + $0x1d0] sm:$0xff]
    %v82 = vld [vmem:[%s1 + $0x1d8] sm:$0xff]
    %v83 = vld [vmem:[%s1 + $0x1e0] sm:$0xff]
    %v84 = vld [vmem:[%s1 + $0x1e8] sm:$0xff]
    %v85 = vld [vmem:[%s1 + $0x1f0] sm:$0xff]
    %v86 = vld [vmem:[%s1 + $0x1f8] sm:$0xff]
    %v87 = vld [vmem:[%s1 + $0x200] sm:$0xff]
    %v88 = vld [vmem:[%s1 + $0x208] sm:$0xff]
    %v89 = vld [vmem:[%s1 + $0x210] sm:$0xff]
    %v90 = vld [vmem:[%s1 + $0x218] sm:$0xff]
    %v91 = vld [vmem:[%s1 + $0x220] sm:$0xff]
    %v92 = vld [vmem:[%s1 + $0x228] sm:$0xff]
    %v93 = vld [vmem:[%s1 + $0x230] sm:$0xff]
    %v94 = vld [vmem:[%s1 + $0x238] sm:$0xff]
    %v95 = vld [vmem:[%s1 + $0x240] sm:$0xff]
    %v96 = vld [vmem:[%s1 + $0x248] sm:$0xff]
    %v97 = vld [vmem:[%s1 + $0x250] sm:$0xff]
    %v98 = vld [vmem:[%s1 + $0x258] sm:$0xff]
    %v99 = vld [vmem:[%s1 + $0x260] sm:$0xff]
    %v100 = vld [vmem:[%s1 + $0x268] sm:$0xff]
    %v101 = vld [vmem:[%s1 + $0x270] sm:$0xff]
    %v102 = vld [vmem:[%s1 + $0x278] sm:$0xff]
    %v103 = vld [vmem:[%s1 + $0x280] sm:$0xff]
    %v104 = vld [vmem:[%s1 + $0x288] sm:$0xff]
    %v105 = vld [vmem:[%s1 + $0x290] sm:$0xff]
    %v106 = vld [vmem:[%s1 + $0x298] sm:$0xff]
    %v107 = vld [vmem:[%s1 + $0x2a0] sm:$0xff]
    %v108 = vld [vmem:[%s1 + $0x2a8] sm:$0xff]
    %v109 = vld [vmem:[%s1 + $0x2b0] sm:$0xff]
    %v110 = vld [vmem:[%s1 + $0x2b8] sm:$0xff]
    %v111 = vld [vmem:[%s1 + $0x2c0] sm:$0xff]
    %v112 = vld [vmem:[%s1 + $0x2c8] sm:$0xff]
    %v113 = vld [vmem:[%s1 + $0x2d0] sm:$0xff]
    %v114 = vld [vmem:[%s1 + $0x2d8] sm:$0xff]
    %v115 = vld [vmem:[%s1 + $0x2e0] sm:$0xff]
    %v116 = vld [vmem:[%s1 + $0x2e8] sm:$0xff]
    %v117 = vld [vmem:[%s1 + $0x2f0] sm:$0xff]
    %v118 = vld [vmem:[%s1 + $0x2f8] sm:$0xff]
    %v119 = vld [vmem:[%s1 + $0x300] sm:$0xff]
    %v120 = vld [vmem:[%s1 + $0x308] sm:$0xff]
    %v121 = vld [vmem:[%s1 + $0x310] sm:$0xff]
    %v122 = vld [vmem:[%s1 + $0x318] sm:$0xff]
    %v123 = vld [vmem:[%s1 + $0x320] sm:$0xff]
    %v124 = vld [vmem:[%s1 + $0x328] sm:$0xff]
    %v125 = vld [vmem:[%s1 + $0x330] sm:$0xff]
    %v126 = vld [vmem:[%s1 + $0x338] sm:$0xff]
    %v127 = vld [vmem:[%s1 + $0x340] sm:$0xff]
    %v128 = vld [vmem:[%s1 + $0x348] sm:$0xff]
    %v129 = vld [vmem:[%s1 + $0x350] sm:$0xff]
    %v130 = vld [vmem:[%s1 + $0x358] sm:$0xff]
    %v131 = vld [vmem:[%s1 + $0x360] sm:$0xff]
    %v132 = vld [vmem:[%s1 + $0x368] sm:$0xff]
    %v133 = vld [vmem:[%s1 + $0x370] sm:$0xff]
    %v134 = vld [vmem:[%s1 + $0x378] sm:$0xff]
    %v135 = vld [vmem:[%s1 + $0x380] sm:$0xff]
    %v136 = vld [vmem:[%s1 + $0x388] sm:$0xff]
    %v137 = vld [vmem:[%s1 + $0x390] sm:$0xff]
    %v138 = vld [vmem:[%s1 + $0x398] sm:$0xff]
    %v139 = vld [vmem:[%s1 + $0x3a0] sm:$0xff]
    %v140 = vld [vmem:[%s1 + $0x3a8] sm:$0xff]
    %v141 = vld [vmem:[%s1 + $0x3b0] sm:$0xff]
    %v142 = vld [vmem:[%s1 + $0x3b8] sm:$0xff]
    %v143 = vld [vmem:[%s1 + $0x3c0] sm:$0xff]
    %v144 = vld [vmem:[%s1 + $0x3c8] sm:$0xff]
    %v145 = vld [vmem:[%s1 + $0x3d0] sm:$0xff]
    %v146 = vld [vmem:[%s1 + $0x3d8] sm:$0xff]
    %v147 = vld [vmem:[%s1 + $0x3e0] sm:$0xff]
    %v148 = vld [vmem:[%s1 + $0x3e8] sm:$0xff]
    %v149 = vld [vmem:[%s1 + $0x3f0] sm:$0xff]
    %v150 = vld [vmem:[%s1 + $0x3f8] sm:$0xff]
    %v151 = vld [vmem:[%s1 + $0x400] sm:$0xff]
    %v152 = vld [vmem:[%s1 + $0x408] sm:$0xff]
    %v153 = vld [vmem:[%s1 + $0x410] sm:$0xff]
    %v154 = vld [vmem:[%s1 + $0x418] sm:$0xff]
    %v155 = vld [vmem:[%s1 + $0x420] sm:$0xff]
    %v156 = vld [vmem:[%s1 + $0x428] sm:$0xff]
    %v157 = vld [vmem:[%s1 + $0x430] sm:$0xff]
    %v158 = vld [vmem:[%s1 + $0x438] sm:$0xff]
    %v159 = vld [vmem:[%s1 + $0x440] sm:$0xff]
    %v160 = vld [vmem:[%s1 + $0x448] sm:$0xff]
    %v161 = vld [vmem:[%s1 + $0x450] sm:$0xff]
    %v162 = vld [vmem:[%s1 + $0x458] sm:$0xff]
    %v163 = vld [vmem:[%s1 + $0x460] sm:$0xff]
    %v164 = vld [vmem:[%s1 + $0x468] sm:$0xff]
    %v165 = vld [vmem:[%s1 + $0x470] sm:$0xff]
    %v166 = vld [vmem:[%s1 + $0x478] sm:$0xff]
    %v167 = vld [vmem:[%s1 + $0x480] sm:$0xff]
    %v168 = vld [vmem:[%s1 + $0x488] sm:$0xff]
    %v169 = vld [vmem:[%s1 + $0x490] sm:$0xff]
    %v170 = vld [vmem:[%s1 + $0x498] sm:$0xff]
    %v171 = vld [vmem:[%s1 + $0x4a0] sm:$0xff]
    %v172 = vld [vmem:[%s1 + $0x4a8] sm:$0xff]
    %v173 = vld [vmem:[%s1 + $0x4b0] sm:$0xff]
    %v174 = vld [vmem:[%s1 + $0x4b8] sm:$0xff]
    %v175 = vld [vmem:[%s1 + $0x4c0] sm:$0xff]
    %v176 = vld [vmem:[%s1 + $0x4c8] sm:$0xff]
    %v177 = vld [vmem:[%s1 + $0x4d0] sm:$0xff]
    %v178 = vld [vmem:[%s1 + $0x4d8] sm:$0xff]
    %v179 = vld [vmem:[%s1 + $0x4e0] sm:$0xff]
    %v180 = vld [vmem:[%s1 + $0x4e8] sm:$0xff]
    %v181 = vld [vmem:[%s1 + $0x4f0] sm:$0xff]
    %v182 = vld [vmem:[%s1 + $0x4f8] sm:$0xff]
    %v183 = vld [vmem:[%s1 + $0x500] sm:$0xff]
    %v184 = vld [vmem:[%s1 + $0x508] sm:$0xff]
    %v185 = vld [vmem:[%s1 + $0x510] sm:$0xff]
    %v186 = vld [vmem:[%s1 + $0x518] sm:$0xff]
    %v187 = vld [vmem:[%s1 + $0x520] sm:$0xff]
    %v188 = vld [vmem:[%s1 + $0x528] sm:$0xff]
    %v189 = vld [vmem:[%s1 + $0x530] sm:$0xff]
    %v190 = vld [vmem:[%s1 + $0x538] sm:$0xff]
    %v191 = vld [vmem:[%s1 + $0x540] sm:$0xff]
    %v192 = vld [vmem:[%s1 + $0x548] sm:$0xff]
    %v193 = vld [vmem:[%s1 + $0x550] sm:$0xff]
    %v194 = vld [vmem:[%s1 + $0x558] sm:$0xff]
    %v195 = vld [vmem:[%s1 + $0x560] sm:$0xff]
    %v196 = vld [vmem:[%s1 + $0x568] sm:$0xff]
    %v197 = vld [vmem:[%s1 + $0x570] sm:$0xff]
    %v198 = vld [vmem:[%s1 + $0x578] sm:$0xff]
    %v199 = vld [vmem:[%s1 + $0x580] sm:$0xff]
    %v200 = vld [vmem:[%s1 + $0x588] sm:$0xff]
    %v201 = vld [vmem:[%s1 + $0x590] sm:$0xff]
    %v202 = vld [vmem:[%s1 + $0x598] sm:$0xff]
    %v203 = vld [vmem:[%s1 + $0x5a0] sm:$0xff]
    %v204 = vld [vmem:[%s1 + $0x5a8] sm:$0xff]
    %v205 = vld [vmem:[%s1 + $0x5b0] sm:$0xff]
    %v206 = vld [vmem:[%s1 + $0x5b8] sm:$0xff]
    %v207 = vld [vmem:[%s1 + $0x5c0] sm:$0xff]
    %v208 = vld [vmem:[%s1 + $0x5c8] sm:$0xff]
    %v209 = vld [vmem:[%s1 + $0x5d0] sm:$0xff]
    %v210 = vld [vmem:[%s1 + $0x5d8] sm:$0xff]
    %v211 = vld [vmem:[%s1 + $0x5e0] sm:$0xff]
    %v212 = vld [vmem:[%s1 + $0x5e8] sm:$0xff]
    %v213 = vld [vmem:[%s1 + $0x5f0] sm:$0xff]
    %v214 = vld [vmem:[%s1 + $0x5f8] sm:$0xff]
    %v215 = vld [vmem:[%s1 + $0x600] sm:$0xff]
    %v216 = vld [vmem:[%s1 + $0x608] sm:$0xff]
    %v217 = vld [vmem:[%s1 + $0x610] sm:$0xff]
    %v218 = vld [vmem:[%s1 + $0x618] sm:$0xff]
    %v219 = vld [vmem:[%s1 + $0x620] sm:$0xff]
    %v220 = vld [vmem:[%s1 + $0x628] sm:$0xff]
    %v221 = vld [vmem:[%s1 + $0x630] sm:$0xff]
    %v222 = vld [vmem:[%s1 + $0x638] sm:$0xff]
    %v223 = vld [vmem:[%s1 + $0x640] sm:$0xff]
    %v224 = vld [vmem:[%s1 + $0x648] sm:$0xff]
    %v225 = vld [vmem:[%s1 + $0x650] sm:$0xff]
    %v226 = vld [vmem:[%s1 + $0x658] sm:$0xff]
    %v227 = vld [vmem:[%s1 + $0x660] sm:$0xff]
    %v228 = vld [vmem:[%s1 + $0x668] sm:$0xff]
    %v229 = vld [vmem:[%s1 + $0x670] sm:$0xff]
    %v230 = vld [vmem:[%s1 + $0x678] sm:$0xff]
    %v231 = vld [vmem:[%s1 + $0x680] sm:$0xff]
    %v232 = vld [vmem:[%s1 + $0x688] sm:$0xff]
    %v233 = vld [vmem:[%s1 + $0x690] sm:$0xff]
    %v234 = vld [vmem:[%s1 + $0x698] sm:$0xff]
    %v235 = vld [vmem:[%s1 + $0x6a0] sm:$0xff]
    %v236 = vld [vmem:[%s1 + $0x6a8] sm:$0xff]
    %v237 = vld [vmem:[%s1 + $0x6b0] sm:$0xff]
    %v238 = vld [vmem:[%s1 + $0x6b8] sm:$0xff]
    %v239 = vld [vmem:[%s1 + $0x6c0] sm:$0xff]
    %v240 = vld [vmem:[%s1 + $0x6c8] sm:$0xff]
    %v241 = vld [vmem:[%s1 + $0x6d0] sm:$0xff]
    %v242 = vld [vmem:[%s1 + $0x6d8] sm:$0xff]
    %v243 = vld [vmem:[%s1 + $0x6e0] sm:$0xff]
    %v244 = vld [vmem:[%s1 + $0x6e8] sm:$0xff]
    %v245 = vld [vmem:[%s1 + $0x6f0] sm:$0xff]
    %v246 = vld [vmem:[%s1 + $0x6f8] sm:$0xff]
    %v247 = vld [vmem:[%s1 + $0x700] sm:$0xff]
    %v248 = vld [vmem:[%s1 + $0x708] sm:$0xff]
    %v249 = vld [vmem:[%s1 + $0x710] sm:$0xff]
    %v250 = vld [vmem:[%s1 + $0x718] sm:$0xff]
    %v251 = vld [vmem:[%s1 + $0x720] sm:$0xff]
    %v252 = vld [vmem:[%s1 + $0x728] sm:$0xff]
    %v253 = vld [vmem:[%s1 + $0x730] sm:$0xff]
    %v254 = vld [vmem:[%s1 + $0x738] sm:$0xff]
    %v255 = vld [vmem:[%s1 + $0x740] sm:$0xff]
    %v256 = vld [vmem:[%s1 + $0x748] sm:$0xff]
    %v257 = vld [vmem:[%s1 + $0x750] sm:$0xff]
    %v258 = vld [vmem:[%s1 + $0x758] sm:$0xff]
    %v259 = vld [vmem:[%s1 + $0x760] sm:$0xff]
    %v260 = vld [vmem:[%s1 + $0x768] sm:$0xff]
    %v261 = vld [vmem:[%s1 + $0x770] sm:$0xff]
    %v262 = vld [vmem:[%s1 + $0x778] sm:$0xff]
    %v263 = vld [vmem:[%s1 + $0x780] sm:$0xff]
    %v264 = vld [vmem:[%s1 + $0x788] sm:$0xff]
    %v265 = vld [vmem:[%s1 + $0x790] sm:$0xff]
    %v266 = vld [vmem:[%s1 + $0x798] sm:$0xff]
    %v267 = vld [vmem:[%s1 + $0x7a0] sm:$0xff]
    %v268 = vld [vmem:[%s1 + $0x7a8] sm:$0xff]
    %v269 = vld [vmem:[%s1 + $0x7b0] sm:$0xff]
    %v270 = vld [vmem:[%s1 + $0x7b8] sm:$0xff]
    %v271 = vld [vmem:[%s1 + $0x7c0] sm:$0xff]
    %v272 = vld [vmem:[%s1 + $0x7c8] sm:$0xff]
    %v273 = vld [vmem:[%s1 + $0x7d0] sm:$0xff]
    %v274 = vld [vmem:[%s1 + $0x7d8] sm:$0xff]
    %v275 = vld [vmem:[%s1 + $0x7e0] sm:$0xff]
    %v276 = vld [vmem:[%s1 + $0x7e8] sm:$0xff]
    %v277 = vld [vmem:[%s1 + $0x7f0] sm:$0xff]
    %v278 = vld [vmem:[%s1 + $0x7f8] sm:$0xff]
    %v279 = vld [vmem:[%s1 + $0x800] sm:$0xff]
    %v280 = vld [vmem:[%s1 + $0x808] sm:$0xff]
    %v281 = vld [vmem:[%s1 + $0x810] sm:$0xff]
    %v282 = vld [vmem:[%s1 + $0x818] sm:$0xff]
    %v283 = vld [vmem:[%s1 + $0x820] sm:$0xff]
    %v284 = vld [vmem:[%s1 + $0x828] sm:$0xff]
    %v285 = vld [vmem:[%s1 + $0x830] sm:$0xff]
    %v286 = vld [vmem:[%s1 + $0x838] sm:$0xff]
    %v287 = vld [vmem:[%s1 + $0x840] sm:$0xff]
    %v288 = vld [vmem:[%s1 + $0x848] sm:$0xff]
    %v289 = vld [vmem:[%s1 + $0x850] sm:$0xff]
    %v290 = vld [vmem:[%s1 + $0x858] sm:$0xff]
    %v291 = vld [vmem:[%s1 + $0x860] sm:$0xff]
    %v292 = vld [vmem:[%s1 + $0x868] sm:$0xff]
    %v293 = vld [vmem:[%s1 + $0x870] sm:$0xff]
    %v294 = vld [vmem:[%s1 + $0x878] sm:$0xff]
    %v295 = vld [vmem:[%s1 + $0x880] sm:$0xff]
    %v296 = vld [vmem:[%s1 + $0x888] sm:$0xff]
    %v297 = vld [vmem:[%s1 + $0x890] sm:$0xff]
    %v298 = vld [vmem:[%s1 + $0x898] sm:$0xff]
    %v299 = vld [vmem:[%s1 + $0x8a0] sm:$0xff]
    %v300 = vld [vmem:[%s1 + $0x8a8] sm:$0xff]
    %v301 = vld [vmem:[%s1 + $0x8b0] sm:$0xff]
    %v302 = vld [vmem:[%s1 + $0x8b8] sm:$0xff]
    %v303 = vld [vmem:[%s1 + $0x8c0] sm:$0xff]
    %v304 = vld [vmem:[%s1 + $0x8c8] sm:$0xff]
    %v305 = vld [vmem:[%s1 + $0x8d0] sm:$0xff]
    %v306 = vld [vmem:[%s1 + $0x8d8] sm:$0xff]
    %v307 = vld [vmem:[%s1 + $0x8e0] sm:$0xff]
    %v308 = vld [vmem:[%s1 + $0x8e8] sm:$0xff]
    %v309 = vld [vmem:[%s1 + $0x8f0] sm:$0xff]
    %v310 = vld [vmem:[%s1 + $0x8f8] sm:$0xff]
    %v311 = vld [vmem:[%s1 + $0x900] sm:$0xff]
    %v312 = vld [vmem:[%s1 + $0x908] sm:$0xff]
    %v313 = vld [vmem:[%s1 + $0x910] sm:$0xff]
    %v314 = vld [vmem:[%s1 + $0x918] sm:$0xff]
    %v315 = vld [vmem:[%s1 + $0x920] sm:$0xff]
    %v316 = vld [vmem:[%s1 + $0x928] sm:$0xff]
    %v317 = vld [vmem:[%s1 + $0x930] sm:$0xff]
    %v318 = vld [vmem:[%s1 + $0x938] sm:$0xff]
    %v319 = vld [vmem:[%s1 + $0x940] sm:$0xff]
    %v320 = vld [vmem:[%s1 + $0x948] sm:$0xff]
    %v321 = vld [vmem:[%s1 + $0x950] sm:$0xff]
    %v322 = vld [vmem:[%s1 + $0x958] sm:$0xff]
    %v323 = vld [vmem:[%s1 + $0x960] sm:$0xff]
    %v324 = vld [vmem:[%s1 + $0x968] sm:$0xff]
    %v325 = vld [vmem:[%s1 + $0x970] sm:$0xff]
    %v326 = vld [vmem:[%s1 + $0x978] sm:$0xff]
    %v327 = vld [vmem:[%s1 + $0x980] sm:$0xff]
    %v328 = vld [vmem:[%s1 + $0x988] sm:$0xff]
    %v329 = vld [vmem:[%s1 + $0x990] sm:$0xff]
    %v330 = vld [vmem:[%s1 + $0x998] sm:$0xff]
    %v331 = vld [vmem:[%s1 + $0x9a0] sm:$0xff]
    %v332 = vld [vmem:[%s1 + $0x9a8] sm:$0xff]
    %v333 = vld [vmem:[%s1 + $0x9b0] sm:$0xff]
    %v334 = vld [vmem:[%s1 + $0x9b8] sm:$0xff]
    %v335 = vld [vmem:[%s1 + $0x9c0] sm:$0xff]
    %v336 = vld [vmem:[%s1 + $0x9c8] sm:$0xff]
    %v337 = vld [vmem:[%s1 + $0x9d0] sm:$0xff]
    %v338 = vld [vmem:[%s1 + $0x9d8] sm:$0xff]
    %v339 = vld [vmem:[%s1 + $0x9e0] sm:$0xff]
    %v340 = vld [vmem:[%s1 + $0x9e8] sm:$0xff]
    %v341 = vld [vmem:[%s1 + $0x9f0] sm:$0xff]
    %v342 = vld [vmem:[%s1 + $0x9f8] sm:$0xff]
    %v343 = vld [vmem:[%s1 + $0xa00] sm:$0xff]
    %v344 = vld [vmem:[%s1 + $0xa08] sm:$0xff]
    %v345 = vld [vmem:[%s1 + $0xa10] sm:$0xff]
    %v346 = vld [vmem:[%s1 + $0xa18] sm:$0xff]
    %v347 = vld [vmem:[%s1 + $0xa20] sm:$0xff]
    %v348 = vld [vmem:[%s1 + $0xa28] sm:$0xff]
    %v349 = vld [vmem:[%s1 + $0xa30] sm:$0xff]
    %v350 = vld [vmem:[%s1 + $0xa38] sm:$0xff]
    %v351 = vld [vmem:[%s1 + $0xa40] sm:$0xff]
    %v352 = vld [vmem:[%s1 + $0xa48] sm:$0xff]
    %v353 = vld [vmem:[%s1 + $0xa50] sm:$0xff]
    %v354 = vld [vmem:[%s1 + $0xa58] sm:$0xff]
    %v355 = vld [vmem:[%s1 + $0xa60] sm:$0xff]
    %v356 = vld [vmem:[%s1 + $0xa68] sm:$0xff]
    %v357 = vld [vmem:[%s1 + $0xa70] sm:$0xff]
    %v358 = vld [vmem:[%s1 + $0xa78] sm:$0xff]
    %v359 = vld [vmem:[%s1 + $0xa80] sm:$0xff]
    %v360 = vld [vmem:[%s1 + $0xa88] sm:$0xff]
    %v361 = vld [vmem:[%s1 + $0xa90] sm:$0xff]
    %v362 = vld [vmem:[%s1 + $0xa98] sm:$0xff]
    %v363 = vld [vmem:[%s1 + $0xaa0] sm:$0xff]
    %v364 = vld [vmem:[%s1 + $0xaa8] sm:$0xff]
    %v365 = vld [vmem:[%s1 + $0xab0] sm:$0xff]
    %v366 = vld [vmem:[%s1 + $0xab8] sm:$0xff]
    %v367 = vld [vmem:[%s1 + $0xac0] sm:$0xff]
    %v368 = vld [vmem:[%s1 + $0xac8] sm:$0xff]
    %v369 = vld [vmem:[%s1 + $0xad0] sm:$0xff]
    %v370 = vld [vmem:[%s1 + $0xad8] sm:$0xff]
    %v371 = vld [vmem:[%s1 + $0xae0] sm:$0xff]
    %v372 = vld [vmem:[%s1 + $0xae8] sm:$0xff]
    %v373 = vld [vmem:[%s1 + $0xaf0] sm:$0xff]
    %v374 = vld [vmem:[%s1 + $0xaf8] sm:$0xff]
    %v375 = vld [vmem:[%s1 + $0xb00] sm:$0xff]
    %v376 = vld [vmem:[%s1 + $0xb08] sm:$0xff]
    %v377 = vld [vmem:[%s1 + $0xb10] sm:$0xff]
    %v378 = vld [vmem:[%s1 + $0xb18] sm:$0xff]
    %v379 = vld [vmem:[%s1 + $0xb20] sm:$0xff]
    %v380 = vld [vmem:[%s1 + $0xb28] sm:$0xff]
    %v381 = vld [vmem:[%s1 + $0xb30] sm:$0xff]
    %v382 = vld [vmem:[%s1 + $0xb38] sm:$0xff]
    %v383 = vld [vmem:[%s1 + $0xb40] sm:$0xff]
    %v384 = vld [vmem:[%s1 + $0xb48] sm:$0xff]
    %v385 = vld [vmem:[%s1 + $0xb50] sm:$0xff]
    %v386 = vld [vmem:[%s1 + $0xb58] sm:$0xff]
    %v387 = vld [vmem:[%s1 + $0xb60] sm:$0xff]
    %v388 = vld [vmem:[%s1 + $0xb68] sm:$0xff]
    %v389 = vld [vmem:[%s1 + $0xb70] sm:$0xff]
    %v390 = vld [vmem:[%s1 + $0xb78] sm:$0xff]
    %v391 = vld [vmem:[%s1 + $0xb80] sm:$0xff]
    %v392 = vld [vmem:[%s1 + $0xb88] sm:$0xff]
    %v393 = vld [vmem:[%s1 + $0xb90] sm:$0xff]
    %v394 = vld [vmem:[%s1 + $0xb98] sm:$0xff]
    %v395 = vld [vmem:[%s1 + $0xba0] sm:$0xff]
    %v396 = vld [vmem:[%s1 + $0xba8] sm:$0xff]
    %v397 = vld [vmem:[%s1 + $0xbb0] sm:$0xff]
    %v398 = vld [vmem:[%s1 + $0xbb8] sm:$0xff]
    %v399 = vld [vmem:[%s1 + $0xbc0] sm:$0xff]
    %v400 = vld [vmem:[%s1 + $0xbc8] sm:$0xff]
    %v401 = vld [vmem:[%s1 + $0xbd0] sm:$0xff]
    %v402 = vld [vmem:[%s1 + $0xbd8] sm:$0xff]
    %v403 = vld [vmem:[%s1 + $0xbe0] sm:$0xff]
    %v404 = vld [vmem:[%s1 + $0xbe8] sm:$0xff]
    %v405 = vld [vmem:[%s1 + $0xbf0] sm:$0xff]
    %v406 = vld [vmem:[%s1 + $0xbf8] sm:$0xff]
    %v407 = vld [vmem:[%s1 + $0xc00] sm:$0xff]
    %v408 = vld [vmem:[%s1 + $0xc08] sm:$0xff]
    %v409 = vld [vmem:[%s1 + $0xc10] sm:$0xff]
    %v410 = vld [vmem:[%s1 + $0xc18] sm:$0xff]
    %v411 = vld [vmem:[%s1 + $0xc20] sm:$0xff]
    %v412 = vld [vmem:[%s1 + $0xc28] sm:$0xff]
    %v413 = vld [vmem:[%s1 + $0xc30] sm:$0xff]
    %v414 = vld [vmem:[%s1 + $0xc38] sm:$0xff]
    %v415 = vld [vmem:[%s1 + $0xc40] sm:$0xff]
    %v416 = vld [vmem:[%s1 + $0xc48] sm:$0xff]
    %v417 = vld [vmem:[%s1 + $0xc50] sm:$0xff]
    %v418 = vld [vmem:[%s1 + $0xc58] sm:$0xff]
    %v419 = vld [vmem:[%s1 + $0xc60] sm:$0xff]
    %v420 = vld [vmem:[%s1 + $0xc68] sm:$0xff]
    %v421 = vld [vmem:[%s1 + $0xc70] sm:$0xff]
    %v422 = vld [vmem:[%s1 + $0xc78] sm:$0xff]
    %v423 = vld [vmem:[%s1 + $0xc80] sm:$0xff]
    %v424 = vld [vmem:[%s1 + $0xc88] sm:$0xff]
    %v425 = vld [vmem:[%s1 + $0xc90] sm:$0xff]
    %v426 = vld [vmem:[%s1 + $0xc98] sm:$0xff]
    %v427 = vld [vmem:[%s1 + $0xca0] sm:$0xff]
    %v428 = vld [vmem:[%s1 + $0xca8] sm:$0xff]
    %v429 = vld [vmem:[%s1 + $0xcb0] sm:$0xff]
    %v430 = vld [vmem:[%s1 + $0xcb8] sm:$0xff]
    %v431 = vld [vmem:[%s1 + $0xcc0] sm:$0xff]
    %v432 = vld [vmem:[%s1 + $0xcc8] sm:$0xff]
    %v433 = vld [vmem:[%s1 + $0xcd0] sm:$0xff]
    %v434 = vld [vmem:[%s1 + $0xcd8] sm:$0xff]
    %v435 = vld [vmem:[%s1 + $0xce0] sm:$0xff]
    %v436 = vld [vmem:[%s1 + $0xce8] sm:$0xff]
    %v437 = vld [vmem:[%s1 + $0xcf0] sm:$0xff]
    %v438 = vld [vmem:[%s1 + $0xcf8] sm:$0xff]
    %v439 = vld [vmem:[%s1 + $0xd00] sm:$0xff]
    %v440 = vld [vmem:[%s1 + $0xd08] sm:$0xff]
    %v441 = vld [vmem:[%s1 + $0xd10] sm:$0xff]
    %v442 = vld [vmem:[%s1 + $0xd18] sm:$0xff]
    %v443 = vld [vmem:[%s1 + $0xd20] sm:$0xff]
    %v444 = vld [vmem:[%s1 + $0xd28] sm:$0xff]
    %v445 = vld [vmem:[%s1 + $0xd30] sm:$0xff]
    %v446 = vld [vmem:[%s1 + $0xd38] sm:$0xff]
    %v447 = vld [vmem:[%s1 + $0xd40] sm:$0xff]
    %v448 = vld [vmem:[%s1 + $0xd48] sm:$0xff]
    %v449 = vld [vmem:[%s1 + $0xd50] sm:$0xff]
    %v450 = vld [vmem:[%s1 + $0xd58] sm:$0xff]
    %v451 = vld [vmem:[%s1 + $0xd60] sm:$0xff]
    %v452 = vld [vmem:[%s1 + $0xd68] sm:$0xff]
    %v453 = vld [vmem:[%s1 + $0xd70] sm:$0xff]
    %v454 = vld [vmem:[%s1 + $0xd78] sm:$0xff]
    %v455 = vld [vmem:[%s1 + $0xd80] sm:$0xff]
    %v456 = vld [vmem:[%s1 + $0xd88] sm:$0xff]
    %v457 = vld [vmem:[%s1 + $0xd90] sm:$0xff]
    %v458 = vld [vmem:[%s1 + $0xd98] sm:$0xff]
    %v459 = vld [vmem:[%s1 + $0xda0] sm:$0xff]
    %v460 = vld [vmem:[%s1 + $0xda8] sm:$0xff]
    %v461 = vld [vmem:[%s1 + $0xdb0] sm:$0xff]
    %v462 = vld [vmem:[%s1 + $0xdb8] sm:$0xff]
    %v463 = vld [vmem:[%s1 + $0xdc0] sm:$0xff]
    %v464 = vld [vmem:[%s1 + $0xdc8] sm:$0xff]
    %v465 = vld [vmem:[%s1 + $0xdd0] sm:$0xff]
    %v466 = vld [vmem:[%s1 + $0xdd8] sm:$0xff]
    %v467 = vld [vmem:[%s1 + $0xde0] sm:$0xff]
    %v468 = vld [vmem:[%s1 + $0xde8] sm:$0xff]
    %v469 = vld [vmem:[%s1 + $0xdf0] sm:$0xff]
    %v470 = vld [vmem:[%s1 + $0xdf8] sm:$0xff]
    %v471 = vld [vmem:[%s1 + $0xe00] sm:$0xff]
    %v472 = vld [vmem:[%s1 + $0xe08] sm:$0xff]
    %v473 = vld [vmem:[%s1 + $0xe10] sm:$0xff]
    %v474 = vld [vmem:[%s1 + $0xe18] sm:$0xff]
    %v475 = vld [vmem:[%s1 + $0xe20] sm:$0xff]
    %v476 = vld [vmem:[%s1 + $0xe28] sm:$0xff]
    %v477 = vld [vmem:[%s1 + $0xe30] sm:$0xff]
    %v478 = vld [vmem:[%s1 + $0xe38] sm:$0xff]
    %v479 = vld [vmem:[%s1 + $0xe40] sm:$0xff]
    %v480 = vld [vmem:[%s1 + $0xe48] sm:$0xff]
    %v481 = vld [vmem:[%s1 + $0xe50] sm:$0xff]
    %v482 = vld [vmem:[%s1 + $0xe58] sm:$0xff]
    %v483 = vld [vmem:[%s1 + $0xe60] sm:$0xff]
    %v484 = vld [vmem:[%s1 + $0xe68] sm:$0xff]
    %v485 = vld [vmem:[%s1 + $0xe70] sm:$0xff]
    %v486 = vld [vmem:[%s1 + $0xe78] sm:$0xff]
    %v487 = vld [vmem:[%s1 + $0xe80] sm:$0xff]
    %v488 = vld [vmem:[%s1 + $0xe88] sm:$0xff]
    %v489 = vld [vmem:[%s1 + $0xe90] sm:$0xff]
    %v490 = vld [vmem:[%s1 + $0xe98] sm:$0xff]
    %v491 = vld [vmem:[%s1 + $0xea0] sm:$0xff]
    %v492 = vld [vmem:[%s1 + $0xea8] sm:$0xff]
    %v493 = vld [vmem:[%s1 + $0xeb0] sm:$0xff]
    %v494 = vld [vmem:[%s1 + $0xeb8] sm:$0xff]
    %v495 = vld [vmem:[%s1 + $0xec0] sm:$0xff]
    %v496 = vld [vmem:[%s1 + $0xec8] sm:$0xff]
    %v497 = vld [vmem:[%s1 + $0xed0] sm:$0xff]
    %v498 = vld [vmem:[%s1 + $0xed8] sm:$0xff]
    %v499 = vld [vmem:[%s1 + $0xee0] sm:$0xff]
    %v500 = vld [vmem:[%s1 + $0xee8] sm:$0xff]
    %v501 = vld [vmem:[%s1 + $0xef0] sm:$0xff]
    %v502 = vld [vmem:[%s1 + $0xef8] sm:$0xff]
    %v503 = vld [vmem:[%s1 + $0xf00] sm:$0xff]
    %v504 = vld [vmem:[%s1 + $0xf08] sm:$0xff]
    %v505 = vld [vmem:[%s1 + $0xf10] sm:$0xff]
    %v506 = vld [vmem:[%s1 + $0xf18] sm:$0xff]
    %v507 = vld [vmem:[%s1 + $0xf20] sm:$0xff]
    %v508 = vld [vmem:[%s1 + $0xf28] sm:$0xff]
    %v509 = vld [vmem:[%s1 + $0xf30] sm:$0xff]
    %v510 = vld [vmem:[%s1 + $0xf38] sm:$0xff]
    %v511 = vld [vmem:[%s1 + $0xf40] sm:$0xff]
    %v512 = vld [vmem:[%s1 + $0xf48] sm:$0xff]
    %v513 = vld [vmem:[%s1 + $0xf50] sm:$0xff]
    %v514 = vld [vmem:[%s1 + $0xf58] sm:$0xff]
    %v515 = vld [vmem:[%s1 + $0xf60] sm:$0xff]
    %v516 = vld [vmem:[%s1 + $0xf68] sm:$0xff]
    %v517 = vld [vmem:[%s1 + $0xf70] sm:$0xff]
    %v518 = vld [vmem:[%s1 + $0xf78] sm:$0xff]
    %v519 = vld [vmem:[%s1 + $0xf80] sm:$0xff]
    %v520 = vld [vmem:[%s1 + $0xf88] sm:$0xff]
    %v521 = vld [vmem:[%s1 + $0xf90] sm:$0xff]
    %v522 = vld [vmem:[%s1 + $0xf98] sm:$0xff]
    %v523 = vld [vmem:[%s1 + $0xfa0] sm:$0xff]
    %v524 = vld [vmem:[%s1 + $0xfa8] sm:$0xff]
    %v525 = vld [vmem:[%s1 + $0xfb0] sm:$0xff]
    %v526 = vld [vmem:[%s1 + $0xfb8] sm:$0xff]
    %v527 = vld [vmem:[%s1 + $0xfc0] sm:$0xff]
    %v528 = vld [vmem:[%s1 + $0xfc8] sm:$0xff]
    %v529 = vld [vmem:[%s1 + $0xfd0] sm:$0xff]
    %v530 = vld [vmem:[%s1 + $0xfd8] sm:$0xff]
    %v531 = vld [vmem:[%s1 + $0xfe0] sm:$0xff]
    %v532 = vld [vmem:[%s1 + $0xfe8] sm:$0xff]
    %v533 = vld [vmem:[%s1 + $0xff0] sm:$0xff]
    %v534 = vld [vmem:[%s1 + $0xff8] sm:$0xff]
    %v535 = vld [vmem:[%s2] sm:$0x1]
    %v537 = vlaneseq
    %v538 = vshrl.u32 %v537, 7
    %v539 = vsub.s32 0, %v538
    %v540 = vrot.slane %v535, %v539
    %v550 = vcombine.high %v15, %v15
    %v552 = vunpack.c.l.s4 1983009808
    %v553 = vunpack.c.0.s8 %v552
    %v554 = vlaneseq
    %v555 = vshrl.u32 %v554, 7
    %v556 = vsub.s32 %v553, %v555
    %v557 = vrot.slane %v15, %v556
    %v559 = vunpack.c.l.s4 1983009808
    %v560 = vunpack.c.0.s8 %v559
    %v561 = vlaneseq
    %v562 = vshrl.u32 %v561, 7
    %v563 = vsub.s32 %v560, %v562
    %v564 = vrot.slane %v550, %v563
    %v565 = vcombine.high %v557, %v557
    %v566 = vcombine.high %v564, %v564
    %v567 = vcombine.high %v16, %v16
    %v569 = vunpack.c.l.s4 1983009808
    %v570 = vunpack.c.0.s8 %v569
    %v571 = vlaneseq
    %v572 = vshrl.u32 %v571, 7
    %v573 = vsub.s32 %v570, %v572
    %v574 = vrot.slane %v16, %v573
    %v576 = vunpack.c.l.s4 1983009808
    %v577 = vunpack.c.0.s8 %v576
    %v578 = vlaneseq
    %v579 = vshrl.u32 %v578, 7
    %v580 = vsub.s32 %v577, %v579
    %v581 = vrot.slane %v567, %v580
    %v582 = vcombine.high %v574, %v574
    %v583 = vcombine.high %v581, %v581
    %v584 = vcombine.high %v17, %v17
    %v586 = vunpack.c.l.s4 1983009808
    %v587 = vunpack.c.0.s8 %v586
    %v588 = vlaneseq
    %v589 = vshrl.u32 %v588, 7
    %v590 = vsub.s32 %v587, %v589
    %v591 = vrot.slane %v17, %v590
    %v593 = vunpack.c.l.s4 1983009808
    %v594 = vunpack.c.0.s8 %v593
    %v595 = vlaneseq
    %v596 = vshrl.u32 %v595, 7
    %v597 = vsub.s32 %v594, %v596
    %v598 = vrot.slane %v584, %v597
    %v599 = vcombine.high %v591, %v591
    %v600 = vcombine.high %v598, %v598
    %v601 = vcombine.high %v18, %v18
    %v603 = vunpack.c.l.s4 1983009808
    %v604 = vunpack.c.0.s8 %v603
    %v605 = vlaneseq
    %v606 = vshrl.u32 %v605, 7
    %v607 = vsub.s32 %v604, %v606
    %v608 = vrot.slane %v18, %v607
    %v610 = vunpack.c.l.s4 1983009808
    %v611 = vunpack.c.0.s8 %v610
    %v612 = vlaneseq
    %v613 = vshrl.u32 %v612, 7
    %v614 = vsub.s32 %v611, %v613
    %v615 = vrot.slane %v601, %v614
    %v616 = vcombine.high %v608, %v608
    %v617 = vcombine.high %v615, %v615
    %v618 = vcombine.high %v19, %v19
    %v620 = vunpack.c.l.s4 1983009808
    %v621 = vunpack.c.0.s8 %v620
    %v622 = vlaneseq
    %v623 = vshrl.u32 %v622, 7
    %v624 = vsub.s32 %v621, %v623
    %v625 = vrot.slane %v19, %v624
    %v627 = vunpack.c.l.s4 1983009808
    %v628 = vunpack.c.0.s8 %v627
    %v629 = vlaneseq
    %v630 = vshrl.u32 %v629, 7
    %v631 = vsub.s32 %v628, %v630
    %v632 = vrot.slane %v618, %v631
    %v633 = vcombine.high %v625, %v625
    %v634 = vcombine.high %v632, %v632
    %v635 = vcombine.high %v20, %v20
    %v637 = vunpack.c.l.s4 1983009808
    %v638 = vunpack.c.0.s8 %v637
    %v639 = vlaneseq
    %v640 = vshrl.u32 %v639, 7
    %v641 = vsub.s32 %v638, %v640
    %v642 = vrot.slane %v20, %v641
    %v644 = vunpack.c.l.s4 1983009808
    %v645 = vunpack.c.0.s8 %v644
    %v646 = vlaneseq
    %v647 = vshrl.u32 %v646, 7
    %v648 = vsub.s32 %v645, %v647
    %v649 = vrot.slane %v635, %v648
    %v650 = vcombine.high %v642, %v642
    %v651 = vcombine.high %v649, %v649
    %v652 = vcombine.high %v21, %v21
    %v654 = vunpack.c.l.s4 1983009808
    %v655 = vunpack.c.0.s8 %v654
    %v656 = vlaneseq
    %v657 = vshrl.u32 %v656, 7
    %v658 = vsub.s32 %v655, %v657
    %v659 = vrot.slane %v21, %v658
    %v661 = vunpack.c.l.s4 1983009808
    %v662 = vunpack.c.0.s8 %v661
    %v663 = vlaneseq
    %v664 = vshrl.u32 %v663, 7
    %v665 = vsub.s32 %v662, %v664
    %v666 = vrot.slane %v652, %v665
    %v667 = vcombine.high %v659, %v659
    %v668 = vcombine.high %v666, %v666
    %v669 = vcombine.high %v22, %v22
    %v671 = vunpack.c.l.s4 1983009808
    %v672 = vunpack.c.0.s8 %v671
    %v673 = vlaneseq
    %v674 = vshrl.u32 %v673, 7
    %v675 = vsub.s32 %v672, %v674
    %v676 = vrot.slane %v22, %v675
    %v678 = vunpack.c.l.s4 1983009808
    %v679 = vunpack.c.0.s8 %v678
    %v680 = vlaneseq
    %v681 = vshrl.u32 %v680, 7
    %v682 = vsub.s32 %v679, %v681
    %v683 = vrot.slane %v669, %v682
    %v684 = vcombine.high %v676, %v676
    %v685 = vcombine.high %v683, %v683
    %718 = vmatprep.subr.mxu0 0.0
    %719 = vmatpush1.msra.mxu0 %v38
    %720 = vmatprep.subr.mxu0 0.0
    %721 = vmatpush1.msra.mxu0 %v37
    %722 = vmatprep.subr.mxu0 0.0
    %723 = vmatpush1.msra.mxu0 %v36
    %724 = vmatprep.subr.mxu0 0.0
    %725 = vmatpush1.msra.mxu0 %v35
    %726 = vmatprep.subr.mxu0 0.0
    %727 = vmatpush1.msra.mxu0 %v34
    %728 = vmatprep.subr.mxu0 0.0
    %729 = vmatpush1.msra.mxu0 %v33
    %730 = vmatprep.subr.mxu0 0.0
    %731 = vmatpush1.msra.mxu0 %v32
    %732 = vmatprep.subr.mxu0 0.0
    %733 = vmatpush1.msra.mxu0 %v31
    %734 = vmatprep.subr.mxu0 0.0
    %735 = vmatpush1.msra.mxu0 %v30
    %736 = vmatprep.subr.mxu0 0.0
    %737 = vmatpush1.msra.mxu0 %v29
    %738 = vmatprep.subr.mxu0 0.0
    %739 = vmatpush1.msra.mxu0 %v28
    %740 = vmatprep.subr.mxu0 0.0
    %741 = vmatpush1.msra.mxu0 %v27
    %742 = vmatprep.subr.mxu0 0.0
    %743 = vmatpush1.msra.mxu0 %v26
    %744 = vmatprep.subr.mxu0 0.0
    %745 = vmatpush1.msra.mxu0 %v25
    %746 = vmatprep.subr.mxu0 0.0
    %747 = vmatpush1.msra.mxu0 %v24
    %748 = vmatprep.subr.mxu0 0.0
    %749 = vmatpush1.msra.mxu0 %v23
    %750 = vmatprep.subr.mxu0 0.0
    %751 = vmatpush2.msra.mxu0 %v54
    %752 = vmatprep.subr.mxu0 0.0
    %753 = vmatpush2.msra.mxu0 %v53
    %754 = vmatprep.subr.mxu0 0.0
    %755 = vmatpush2.msra.mxu0 %v52
    %756 = vmatprep.subr.mxu0 0.0
    %757 = vmatpush2.msra.mxu0 %v51
    %758 = vmatprep.subr.mxu0 0.0
    %759 = vmatpush2.msra.mxu0 %v50
    %760 = vmatprep.subr.mxu0 0.0
    %761 = vmatpush2.msra.mxu0 %v49
    %762 = vmatprep.subr.mxu0 0.0
    %763 = vmatpush2.msra.mxu0 %v48
    %764 = vmatprep.subr.mxu0 0.0
    %765 = vmatpush2.msra.mxu0 %v47
    %766 = vmatprep.subr.mxu0 0.0
    %767 = vmatpush2.msra.mxu0 %v46
    %768 = vmatprep.subr.mxu0 0.0
    %769 = vmatpush2.msra.mxu0 %v45
    %770 = vmatprep.subr.mxu0 0.0
    %771 = vmatpush2.msra.mxu0 %v44
    %772 = vmatprep.subr.mxu0 0.0
    %773 = vmatpush2.msra.mxu0 %v43
    %774 = vmatprep.subr.mxu0 0.0
    %775 = vmatpush2.msra.mxu0 %v42
    %776 = vmatprep.subr.mxu0 0.0
    %777 = vmatpush2.msra.mxu0 %v41
    %778 = vmatprep.subr.mxu0 0.0
    %779 = vmatpush2.msra.mxu0 %v40
    %780 = vmatprep.subr.mxu0 0.0
    %781 = vmatpush2.msra.mxu0 %v39
    %782 = vmatprep.mubr.f32.mxu0 %v565
    %783 = vmatmul.mubr.f32.gmra.mxu0 %v557
    %v784 = vpop.f32.mrf.mxu0
    %v785 = vadd.f32 %v540, %v784
    %v786 = vpop.f32.mrf.mxu0
    %787 = vdwg.mxu0
    %788 = vmatprep.subr.mxu0 0.0
    %789 = vmatpush1.msra.mxu0 %v70
    %790 = vmatprep.subr.mxu0 0.0
    %791 = vmatpush1.msra.mxu0 %v69
    %792 = vmatprep.subr.mxu0 0.0
    %793 = vmatpush1.msra.mxu0 %v68
    %794 = vmatprep.subr.mxu0 0.0
    %795 = vmatpush1.msra.mxu0 %v67
    %796 = vmatprep.subr.mxu0 0.0
    %797 = vmatpush1.msra.mxu0 %v66
    %798 = vmatprep.subr.mxu0 0.0
    %799 = vmatpush1.msra.mxu0 %v65
    %800 = vmatprep.subr.mxu0 0.0
    %801 = vmatpush1.msra.mxu0 %v64
    %802 = vmatprep.subr.mxu0 0.0
    %803 = vmatpush1.msra.mxu0 %v63
    %804 = vmatprep.subr.mxu0 0.0
    %805 = vmatpush1.msra.mxu0 %v62
    %806 = vmatprep.subr.mxu0 0.0
    %807 = vmatpush1.msra.mxu0 %v61
    %808 = vmatprep.subr.mxu0 0.0
    %809 = vmatpush1.msra.mxu0 %v60
    %810 = vmatprep.subr.mxu0 0.0
    %811 = vmatpush1.msra.mxu0 %v59
    %812 = vmatprep.subr.mxu0 0.0
    %813 = vmatpush1.msra.mxu0 %v58
    %814 = vmatprep.subr.mxu0 0.0
    %815 = vmatpush1.msra.mxu0 %v57
    %816 = vmatprep.subr.mxu0 0.0
    %817 = vmatpush1.msra.mxu0 %v56
    %818 = vmatprep.subr.mxu0 0.0
    %819 = vmatpush1.msra.mxu0 %v55
    %820 = vmatprep.subr.mxu0 0.0
    %821 = vmatpush2.msra.mxu0 %v86
    %822 = vmatprep.subr.mxu0 0.0
    %823 = vmatpush2.msra.mxu0 %v85
    %824 = vmatprep.subr.mxu0 0.0
    %825 = vmatpush2.msra.mxu0 %v84
    %826 = vmatprep.subr.mxu0 0.0
    %827 = vmatpush2.msra.mxu0 %v83
    %828 = vmatprep.subr.mxu0 0.0
    %829 = vmatpush2.msra.mxu0 %v82
    %830 = vmatprep.subr.mxu0 0.0
    %831 = vmatpush2.msra.mxu0 %v81
    %832 = vmatprep.subr.mxu0 0.0
    %833 = vmatpush2.msra.mxu0 %v80
    %834 = vmatprep.subr.mxu0 0.0
    %835 = vmatpush2.msra.mxu0 %v79
    %836 = vmatprep.subr.mxu0 0.0
    %837 = vmatpush2.msra.mxu0 %v78
    %838 = vmatprep.subr.mxu0 0.0
    %839 = vmatpush2.msra.mxu0 %v77
    %840 = vmatprep.subr.mxu0 0.0
    %841 = vmatpush2.msra.mxu0 %v76
    %842 = vmatprep.subr.mxu0 0.0
    %843 = vmatpush2.msra.mxu0 %v75
    %844 = vmatprep.subr.mxu0 0.0
    %845 = vmatpush2.msra.mxu0 %v74
    %846 = vmatprep.subr.mxu0 0.0
    %847 = vmatpush2.msra.mxu0 %v73
    %848 = vmatprep.subr.mxu0 0.0
    %849 = vmatpush2.msra.mxu0 %v72
    %850 = vmatprep.subr.mxu0 0.0
    %851 = vmatpush2.msra.mxu0 %v71
    %852 = vmatprep.mubr.f32.mxu0 %v566
    %853 = vmatmul.mubr.f32.gmra.mxu0 %v564
    %v854 = vpop.f32.mrf.mxu0
    %v855 = vadd.f32 %v785, %v854
    %v856 = vpop.f32.mrf.mxu0
    %857 = vdwg.mxu0
    %858 = vmatprep.subr.mxu0 0.0
    %859 = vmatpush1.msra.mxu0 %v102
    %860 = vmatprep.subr.mxu0 0.0
    %861 = vmatpush1.msra.mxu0 %v101
    %862 = vmatprep.subr.mxu0 0.0
    %863 = vmatpush1.msra.mxu0 %v100
    %864 = vmatprep.subr.mxu0 0.0
    %865 = vmatpush1.msra.mxu0 %v99
    %866 = vmatprep.subr.mxu0 0.0
    %867 = vmatpush1.msra.mxu0 %v98
    %868 = vmatprep.subr.mxu0 0.0
    %869 = vmatpush1.msra.mxu0 %v97
    %870 = vmatprep.subr.mxu0 0.0
    %871 = vmatpush1.msra.mxu0 %v96
    %872 = vmatprep.subr.mxu0 0.0
    %873 = vmatpush1.msra.mxu0 %v95
    %874 = vmatprep.subr.mxu0 0.0
    %875 = vmatpush1.msra.mxu0 %v94
    %876 = vmatprep.subr.mxu0 0.0
    %877 = vmatpush1.msra.mxu0 %v93
    %878 = vmatprep.subr.mxu0 0.0
    %879 = vmatpush1.msra.mxu0 %v92
    %880 = vmatprep.subr.mxu0 0.0
    %881 = vmatpush1.msra.mxu0 %v91
    %882 = vmatprep.subr.mxu0 0.0
    %883 = vmatpush1.msra.mxu0 %v90
    %884 = vmatprep.subr.mxu0 0.0
    %885 = vmatpush1.msra.mxu0 %v89
    %886 = vmatprep.subr.mxu0 0.0
    %887 = vmatpush1.msra.mxu0 %v88
    %888 = vmatprep.subr.mxu0 0.0
    %889 = vmatpush1.msra.mxu0 %v87
    %890 = vmatprep.subr.mxu0 0.0
    %891 = vmatpush2.msra.mxu0 %v118
    %892 = vmatprep.subr.mxu0 0.0
    %893 = vmatpush2.msra.mxu0 %v117
    %894 = vmatprep.subr.mxu0 0.0
    %895 = vmatpush2.msra.mxu0 %v116
    %896 = vmatprep.subr.mxu0 0.0
    %897 = vmatpush2.msra.mxu0 %v115
    %898 = vmatprep.subr.mxu0 0.0
    %899 = vmatpush2.msra.mxu0 %v114
    %900 = vmatprep.subr.mxu0 0.0
    %901 = vmatpush2.msra.mxu0 %v113
    %902 = vmatprep.subr.mxu0 0.0
    %903 = vmatpush2.msra.mxu0 %v112
    %904 = vmatprep.subr.mxu0 0.0
    %905 = vmatpush2.msra.mxu0 %v111
    %906 = vmatprep.subr.mxu0 0.0
    %907 = vmatpush2.msra.mxu0 %v110
    %908 = vmatprep.subr.mxu0 0.0
    %909 = vmatpush2.msra.mxu0 %v109
    %910 = vmatprep.subr.mxu0 0.0
    %911 = vmatpush2.msra.mxu0 %v108
    %912 = vmatprep.subr.mxu0 0.0
    %913 = vmatpush2.msra.mxu0 %v107
    %914 = vmatprep.subr.mxu0 0.0
    %915 = vmatpush2.msra.mxu0 %v106
    %916 = vmatprep.subr.mxu0 0.0
    %917 = vmatpush2.msra.mxu0 %v105
    %918 = vmatprep.subr.mxu0 0.0
    %919 = vmatpush2.msra.mxu0 %v104
    %920 = vmatprep.subr.mxu0 0.0
    %921 = vmatpush2.msra.mxu0 %v103
    %922 = vmatprep.mubr.f32.mxu0 %v582
    %923 = vmatmul.mubr.f32.gmra.mxu0 %v574
    %v924 = vpop.f32.mrf.mxu0
    %v925 = vadd.f32 %v855, %v924
    %v926 = vpop.f32.mrf.mxu0
    %927 = vdwg.mxu0
    %928 = vmatprep.subr.mxu0 0.0
    %929 = vmatpush1.msra.mxu0 %v134
    %930 = vmatprep.subr.mxu0 0.0
    %931 = vmatpush1.msra.mxu0 %v133
    %932 = vmatprep.subr.mxu0 0.0
    %933 = vmatpush1.msra.mxu0 %v132
    %934 = vmatprep.subr.mxu0 0.0
    %935 = vmatpush1.msra.mxu0 %v131
    %936 = vmatprep.subr.mxu0 0.0
    %937 = vmatpush1.msra.mxu0 %v130
    %938 = vmatprep.subr.mxu0 0.0
    %939 = vmatpush1.msra.mxu0 %v129
    %940 = vmatprep.subr.mxu0 0.0
    %941 = vmatpush1.msra.mxu0 %v128
    %942 = vmatprep.subr.mxu0 0.0
    %943 = vmatpush1.msra.mxu0 %v127
    %944 = vmatprep.subr.mxu0 0.0
    %945 = vmatpush1.msra.mxu0 %v126
    %946 = vmatprep.subr.mxu0 0.0
    %947 = vmatpush1.msra.mxu0 %v125
    %948 = vmatprep.subr.mxu0 0.0
    %949 = vmatpush1.msra.mxu0 %v124
    %950 = vmatprep.subr.mxu0 0.0
    %951 = vmatpush1.msra.mxu0 %v123
    %952 = vmatprep.subr.mxu0 0.0
    %953 = vmatpush1.msra.mxu0 %v122
    %954 = vmatprep.subr.mxu0 0.0
    %955 = vmatpush1.msra.mxu0 %v121
    %956 = vmatprep.subr.mxu0 0.0
    %957 = vmatpush1.msra.mxu0 %v120
    %958 = vmatprep.subr.mxu0 0.0
    %959 = vmatpush1.msra.mxu0 %v119
    %960 = vmatprep.subr.mxu0 0.0
    %961 = vmatpush2.msra.mxu0 %v150
    %962 = vmatprep.subr.mxu0 0.0
    %963 = vmatpush2.msra.mxu0 %v149
    %964 = vmatprep.subr.mxu0 0.0
    %965 = vmatpush2.msra.mxu0 %v148
    %966 = vmatprep.subr.mxu0 0.0
    %967 = vmatpush2.msra.mxu0 %v147
    %968 = vmatprep.subr.mxu0 0.0
    %969 = vmatpush2.msra.mxu0 %v146
    %970 = vmatprep.subr.mxu0 0.0
    %971 = vmatpush2.msra.mxu0 %v145
    %972 = vmatprep.subr.mxu0 0.0
    %973 = vmatpush2.msra.mxu0 %v144
    %974 = vmatprep.subr.mxu0 0.0
    %975 = vmatpush2.msra.mxu0 %v143
    %976 = vmatprep.subr.mxu0 0.0
    %977 = vmatpush2.msra.mxu0 %v142
    %978 = vmatprep.subr.mxu0 0.0
    %979 = vmatpush2.msra.mxu0 %v141
    %980 = vmatprep.subr.mxu0 0.0
    %981 = vmatpush2.msra.mxu0 %v140
    %982 = vmatprep.subr.mxu0 0.0
    %983 = vmatpush2.msra.mxu0 %v139
    %984 = vmatprep.subr.mxu0 0.0
    %985 = vmatpush2.msra.mxu0 %v138
    %986 = vmatprep.subr.mxu0 0.0
    %987 = vmatpush2.msra.mxu0 %v137
    %988 = vmatprep.subr.mxu0 0.0
    %989 = vmatpush2.msra.mxu0 %v136
    %990 = vmatprep.subr.mxu0 0.0
    %991 = vmatpush2.msra.mxu0 %v135
    %992 = vmatprep.mubr.f32.mxu0 %v583
    %993 = vmatmul.mubr.f32.gmra.mxu0 %v581
    %v994 = vpop.f32.mrf.mxu0
    %v995 = vadd.f32 %v925, %v994
    %v996 = vpop.f32.mrf.mxu0
    %997 = vdwg.mxu0
    %998 = vmatprep.subr.mxu0 0.0
    %999 = vmatpush1.msra.mxu0 %v166
    %1000 = vmatprep.subr.mxu0 0.0
    %1001 = vmatpush1.msra.mxu0 %v165
    %1002 = vmatprep.subr.mxu0 0.0
    %1003 = vmatpush1.msra.mxu0 %v164
    %1004 = vmatprep.subr.mxu0 0.0
    %1005 = vmatpush1.msra.mxu0 %v163
    %1006 = vmatprep.subr.mxu0 0.0
    %1007 = vmatpush1.msra.mxu0 %v162
    %1008 = vmatprep.subr.mxu0 0.0
    %1009 = vmatpush1.msra.mxu0 %v161
    %1010 = vmatprep.subr.mxu0 0.0
    %1011 = vmatpush1.msra.mxu0 %v160
    %1012 = vmatprep.subr.mxu0 0.0
    %1013 = vmatpush1.msra.mxu0 %v159
    %1014 = vmatprep.subr.mxu0 0.0
    %1015 = vmatpush1.msra.mxu0 %v158
    %1016 = vmatprep.subr.mxu0 0.0
    %1017 = vmatpush1.msra.mxu0 %v157
    %1018 = vmatprep.subr.mxu0 0.0
    %1019 = vmatpush1.msra.mxu0 %v156
    %1020 = vmatprep.subr.mxu0 0.0
    %1021 = vmatpush1.msra.mxu0 %v155
    %1022 = vmatprep.subr.mxu0 0.0
    %1023 = vmatpush1.msra.mxu0 %v154
    %1024 = vmatprep.subr.mxu0 0.0
    %1025 = vmatpush1.msra.mxu0 %v153
    %1026 = vmatprep.subr.mxu0 0.0
    %1027 = vmatpush1.msra.mxu0 %v152
    %1028 = vmatprep.subr.mxu0 0.0
    %1029 = vmatpush1.msra.mxu0 %v151
    %1030 = vmatprep.subr.mxu0 0.0
    %1031 = vmatpush2.msra.mxu0 %v182
    %1032 = vmatprep.subr.mxu0 0.0
    %1033 = vmatpush2.msra.mxu0 %v181
    %1034 = vmatprep.subr.mxu0 0.0
    %1035 = vmatpush2.msra.mxu0 %v180
    %1036 = vmatprep.subr.mxu0 0.0
    %1037 = vmatpush2.msra.mxu0 %v179
    %1038 = vmatprep.subr.mxu0 0.0
    %1039 = vmatpush2.msra.mxu0 %v178
    %1040 = vmatprep.subr.mxu0 0.0
    %1041 = vmatpush2.msra.mxu0 %v177
    %1042 = vmatprep.subr.mxu0 0.0
    %1043 = vmatpush2.msra.mxu0 %v176
    %1044 = vmatprep.subr.mxu0 0.0
    %1045 = vmatpush2.msra.mxu0 %v175
    %1046 = vmatprep.subr.mxu0 0.0
    %1047 = vmatpush2.msra.mxu0 %v174
    %1048 = vmatprep.subr.mxu0 0.0
    %1049 = vmatpush2.msra.mxu0 %v173
    %1050 = vmatprep.subr.mxu0 0.0
    %1051 = vmatpush2.msra.mxu0 %v172
    %1052 = vmatprep.subr.mxu0 0.0
    %1053 = vmatpush2.msra.mxu0 %v171
    %1054 = vmatprep.subr.mxu0 0.0
    %1055 = vmatpush2.msra.mxu0 %v170
    %1056 = vmatprep.subr.mxu0 0.0
    %1057 = vmatpush2.msra.mxu0 %v169
    %1058 = vmatprep.subr.mxu0 0.0
    %1059 = vmatpush2.msra.mxu0 %v168
    %1060 = vmatprep.subr.mxu0 0.0
    %1061 = vmatpush2.msra.mxu0 %v167
    %1062 = vmatprep.mubr.f32.mxu0 %v599
    %1063 = vmatmul.mubr.f32.gmra.mxu0 %v591
    %v1064 = vpop.f32.mrf.mxu0
    %v1065 = vadd.f32 %v995, %v1064
    %v1066 = vpop.f32.mrf.mxu0
    %1067 = vdwg.mxu0
    %1068 = vmatprep.subr.mxu0 0.0
    %1069 = vmatpush1.msra.mxu0 %v198
    %1070 = vmatprep.subr.mxu0 0.0
    %1071 = vmatpush1.msra.mxu0 %v197
    %1072 = vmatprep.subr.mxu0 0.0
    %1073 = vmatpush1.msra.mxu0 %v196
    %1074 = vmatprep.subr.mxu0 0.0
    %1075 = vmatpush1.msra.mxu0 %v195
    %1076 = vmatprep.subr.mxu0 0.0
    %1077 = vmatpush1.msra.mxu0 %v194
    %1078 = vmatprep.subr.mxu0 0.0
    %1079 = vmatpush1.msra.mxu0 %v193
    %1080 = vmatprep.subr.mxu0 0.0
    %1081 = vmatpush1.msra.mxu0 %v192
    %1082 = vmatprep.subr.mxu0 0.0
    %1083 = vmatpush1.msra.mxu0 %v191
    %1084 = vmatprep.subr.mxu0 0.0
    %1085 = vmatpush1.msra.mxu0 %v190
    %1086 = vmatprep.subr.mxu0 0.0
    %1087 = vmatpush1.msra.mxu0 %v189
    %1088 = vmatprep.subr.mxu0 0.0
    %1089 = vmatpush1.msra.mxu0 %v188
    %1090 = vmatprep.subr.mxu0 0.0
    %1091 = vmatpush1.msra.mxu0 %v187
    %1092 = vmatprep.subr.mxu0 0.0
    %1093 = vmatpush1.msra.mxu0 %v186
    %1094 = vmatprep.subr.mxu0 0.0
    %1095 = vmatpush1.msra.mxu0 %v185
    %1096 = vmatprep.subr.mxu0 0.0
    %1097 = vmatpush1.msra.mxu0 %v184
    %1098 = vmatprep.subr.mxu0 0.0
    %1099 = vmatpush1.msra.mxu0 %v183
    %1100 = vmatprep.subr.mxu0 0.0
    %1101 = vmatpush2.msra.mxu0 %v214
    %1102 = vmatprep.subr.mxu0 0.0
    %1103 = vmatpush2.msra.mxu0 %v213
    %1104 = vmatprep.subr.mxu0 0.0
    %1105 = vmatpush2.msra.mxu0 %v212
    %1106 = vmatprep.subr.mxu0 0.0
    %1107 = vmatpush2.msra.mxu0 %v211
    %1108 = vmatprep.subr.mxu0 0.0
    %1109 = vmatpush2.msra.mxu0 %v210
    %1110 = vmatprep.subr.mxu0 0.0
    %1111 = vmatpush2.msra.mxu0 %v209
    %1112 = vmatprep.subr.mxu0 0.0
    %1113 = vmatpush2.msra.mxu0 %v208
    %1114 = vmatprep.subr.mxu0 0.0
    %1115 = vmatpush2.msra.mxu0 %v207
    %1116 = vmatprep.subr.mxu0 0.0
    %1117 = vmatpush2.msra.mxu0 %v206
    %1118 = vmatprep.subr.mxu0 0.0
    %1119 = vmatpush2.msra.mxu0 %v205
    %1120 = vmatprep.subr.mxu0 0.0
    %1121 = vmatpush2.msra.mxu0 %v204
    %1122 = vmatprep.subr.mxu0 0.0
    %1123 = vmatpush2.msra.mxu0 %v203
    %1124 = vmatprep.subr.mxu0 0.0
    %1125 = vmatpush2.msra.mxu0 %v202
    %1126 = vmatprep.subr.mxu0 0.0
    %1127 = vmatpush2.msra.mxu0 %v201
    %1128 = vmatprep.subr.mxu0 0.0
    %1129 = vmatpush2.msra.mxu0 %v200
    %1130 = vmatprep.subr.mxu0 0.0
    %1131 = vmatpush2.msra.mxu0 %v199
    %1132 = vmatprep.mubr.f32.mxu0 %v600
    %1133 = vmatmul.mubr.f32.gmra.mxu0 %v598
    %v1134 = vpop.f32.mrf.mxu0
    %v1135 = vadd.f32 %v1065, %v1134
    %v1136 = vpop.f32.mrf.mxu0
    %1137 = vdwg.mxu0
    %1138 = vmatprep.subr.mxu0 0.0
    %1139 = vmatpush1.msra.mxu0 %v230
    %1140 = vmatprep.subr.mxu0 0.0
    %1141 = vmatpush1.msra.mxu0 %v229
    %1142 = vmatprep.subr.mxu0 0.0
    %1143 = vmatpush1.msra.mxu0 %v228
    %1144 = vmatprep.subr.mxu0 0.0
    %1145 = vmatpush1.msra.mxu0 %v227
    %1146 = vmatprep.subr.mxu0 0.0
    %1147 = vmatpush1.msra.mxu0 %v226
    %1148 = vmatprep.subr.mxu0 0.0
    %1149 = vmatpush1.msra.mxu0 %v225
    %1150 = vmatprep.subr.mxu0 0.0
    %1151 = vmatpush1.msra.mxu0 %v224
    %1152 = vmatprep.subr.mxu0 0.0
    %1153 = vmatpush1.msra.mxu0 %v223
    %1154 = vmatprep.subr.mxu0 0.0
    %1155 = vmatpush1.msra.mxu0 %v222
    %1156 = vmatprep.subr.mxu0 0.0
    %1157 = vmatpush1.msra.mxu0 %v221
    %1158 = vmatprep.subr.mxu0 0.0
    %1159 = vmatpush1.msra.mxu0 %v220
    %1160 = vmatprep.subr.mxu0 0.0
    %1161 = vmatpush1.msra.mxu0 %v219
    %1162 = vmatprep.subr.mxu0 0.0
    %1163 = vmatpush1.msra.mxu0 %v218
    %1164 = vmatprep.subr.mxu0 0.0
    %1165 = vmatpush1.msra.mxu0 %v217
    %1166 = vmatprep.subr.mxu0 0.0
    %1167 = vmatpush1.msra.mxu0 %v216
    %1168 = vmatprep.subr.mxu0 0.0
    %1169 = vmatpush1.msra.mxu0 %v215
    %1170 = vmatprep.subr.mxu0 0.0
    %1171 = vmatpush2.msra.mxu0 %v246
    %1172 = vmatprep.subr.mxu0 0.0
    %1173 = vmatpush2.msra.mxu0 %v245
    %1174 = vmatprep.subr.mxu0 0.0
    %1175 = vmatpush2.msra.mxu0 %v244
    %1176 = vmatprep.subr.mxu0 0.0
    %1177 = vmatpush2.msra.mxu0 %v243
    %1178 = vmatprep.subr.mxu0 0.0
    %1179 = vmatpush2.msra.mxu0 %v242
    %1180 = vmatprep.subr.mxu0 0.0
    %1181 = vmatpush2.msra.mxu0 %v241
    %1182 = vmatprep.subr.mxu0 0.0
    %1183 = vmatpush2.msra.mxu0 %v240
    %1184 = vmatprep.subr.mxu0 0.0
    %1185 = vmatpush2.msra.mxu0 %v239
    %1186 = vmatprep.subr.mxu0 0.0
    %1187 = vmatpush2.msra.mxu0 %v238
    %1188 = vmatprep.subr.mxu0 0.0
    %1189 = vmatpush2.msra.mxu0 %v237
    %1190 = vmatprep.subr.mxu0 0.0
    %1191 = vmatpush2.msra.mxu0 %v236
    %1192 = vmatprep.subr.mxu0 0.0
    %1193 = vmatpush2.msra.mxu0 %v235
    %1194 = vmatprep.subr.mxu0 0.0
    %1195 = vmatpush2.msra.mxu0 %v234
    %1196 = vmatprep.subr.mxu0 0.0
    %1197 = vmatpush2.msra.mxu0 %v233
    %1198 = vmatprep.subr.mxu0 0.0
    %1199 = vmatpush2.msra.mxu0 %v232
    %1200 = vmatprep.subr.mxu0 0.0
    %1201 = vmatpush2.msra.mxu0 %v231
    %1202 = vmatprep.mubr.f32.mxu0 %v616
    %1203 = vmatmul.mubr.f32.gmra.mxu0 %v608
    %v1204 = vpop.f32.mrf.mxu0
    %v1205 = vadd.f32 %v1135, %v1204
    %v1206 = vpop.f32.mrf.mxu0
    %1207 = vdwg.mxu0
    %1208 = vmatprep.subr.mxu0 0.0
    %1209 = vmatpush1.msra.mxu0 %v262
    %1210 = vmatprep.subr.mxu0 0.0
    %1211 = vmatpush1.msra.mxu0 %v261
    %1212 = vmatprep.subr.mxu0 0.0
    %1213 = vmatpush1.msra.mxu0 %v260
    %1214 = vmatprep.subr.mxu0 0.0
    %1215 = vmatpush1.msra.mxu0 %v259
    %1216 = vmatprep.subr.mxu0 0.0
    %1217 = vmatpush1.msra.mxu0 %v258
    %1218 = vmatprep.subr.mxu0 0.0
    %1219 = vmatpush1.msra.mxu0 %v257
    %1220 = vmatprep.subr.mxu0 0.0
    %1221 = vmatpush1.msra.mxu0 %v256
    %1222 = vmatprep.subr.mxu0 0.0
    %1223 = vmatpush1.msra.mxu0 %v255
    %1224 = vmatprep.subr.mxu0 0.0
    %1225 = vmatpush1.msra.mxu0 %v254
    %1226 = vmatprep.subr.mxu0 0.0
    %1227 = vmatpush1.msra.mxu0 %v253
    %1228 = vmatprep.subr.mxu0 0.0
    %1229 = vmatpush1.msra.mxu0 %v252
    %1230 = vmatprep.subr.mxu0 0.0
    %1231 = vmatpush1.msra.mxu0 %v251
    %1232 = vmatprep.subr.mxu0 0.0
    %1233 = vmatpush1.msra.mxu0 %v250
    %1234 = vmatprep.subr.mxu0 0.0
    %1235 = vmatpush1.msra.mxu0 %v249
    %1236 = vmatprep.subr.mxu0 0.0
    %1237 = vmatpush1.msra.mxu0 %v248
    %1238 = vmatprep.subr.mxu0 0.0
    %1239 = vmatpush1.msra.mxu0 %v247
    %1240 = vmatprep.subr.mxu0 0.0
    %1241 = vmatpush2.msra.mxu0 %v278
    %1242 = vmatprep.subr.mxu0 0.0
    %1243 = vmatpush2.msra.mxu0 %v277
    %1244 = vmatprep.subr.mxu0 0.0
    %1245 = vmatpush2.msra.mxu0 %v276
    %1246 = vmatprep.subr.mxu0 0.0
    %1247 = vmatpush2.msra.mxu0 %v275
    %1248 = vmatprep.subr.mxu0 0.0
    %1249 = vmatpush2.msra.mxu0 %v274
    %1250 = vmatprep.subr.mxu0 0.0
    %1251 = vmatpush2.msra.mxu0 %v273
    %1252 = vmatprep.subr.mxu0 0.0
    %1253 = vmatpush2.msra.mxu0 %v272
    %1254 = vmatprep.subr.mxu0 0.0
    %1255 = vmatpush2.msra.mxu0 %v271
    %1256 = vmatprep.subr.mxu0 0.0
    %1257 = vmatpush2.msra.mxu0 %v270
    %1258 = vmatprep.subr.mxu0 0.0
    %1259 = vmatpush2.msra.mxu0 %v269
    %1260 = vmatprep.subr.mxu0 0.0
    %1261 = vmatpush2.msra.mxu0 %v268
    %1262 = vmatprep.subr.mxu0 0.0
    %1263 = vmatpush2.msra.mxu0 %v267
    %1264 = vmatprep.subr.mxu0 0.0
    %1265 = vmatpush2.msra.mxu0 %v266
    %1266 = vmatprep.subr.mxu0 0.0
    %1267 = vmatpush2.msra.mxu0 %v265
    %1268 = vmatprep.subr.mxu0 0.0
    %1269 = vmatpush2.msra.mxu0 %v264
    %1270 = vmatprep.subr.mxu0 0.0
    %1271 = vmatpush2.msra.mxu0 %v263
    %1272 = vmatprep.mubr.f32.mxu0 %v617
    %1273 = vmatmul.mubr.f32.gmra.mxu0 %v615
    %v1274 = vpop.f32.mrf.mxu0
    %v1275 = vadd.f32 %v1205, %v1274
    %v1276 = vpop.f32.mrf.mxu0
    %1277 = vdwg.mxu0
    %1278 = vmatprep.subr.mxu0 0.0
    %1279 = vmatpush1.msra.mxu0 %v294
    %1280 = vmatprep.subr.mxu0 0.0
    %1281 = vmatpush1.msra.mxu0 %v293
    %1282 = vmatprep.subr.mxu0 0.0
    %1283 = vmatpush1.msra.mxu0 %v292
    %1284 = vmatprep.subr.mxu0 0.0
    %1285 = vmatpush1.msra.mxu0 %v291
    %1286 = vmatprep.subr.mxu0 0.0
    %1287 = vmatpush1.msra.mxu0 %v290
    %1288 = vmatprep.subr.mxu0 0.0
    %1289 = vmatpush1.msra.mxu0 %v289
    %1290 = vmatprep.subr.mxu0 0.0
    %1291 = vmatpush1.msra.mxu0 %v288
    %1292 = vmatprep.subr.mxu0 0.0
    %1293 = vmatpush1.msra.mxu0 %v287
    %1294 = vmatprep.subr.mxu0 0.0
    %1295 = vmatpush1.msra.mxu0 %v286
    %1296 = vmatprep.subr.mxu0 0.0
    %1297 = vmatpush1.msra.mxu0 %v285
    %1298 = vmatprep.subr.mxu0 0.0
    %1299 = vmatpush1.msra.mxu0 %v284
    %1300 = vmatprep.subr.mxu0 0.0
    %1301 = vmatpush1.msra.mxu0 %v283
    %1302 = vmatprep.subr.mxu0 0.0
    %1303 = vmatpush1.msra.mxu0 %v282
    %1304 = vmatprep.subr.mxu0 0.0
    %1305 = vmatpush1.msra.mxu0 %v281
    %1306 = vmatprep.subr.mxu0 0.0
    %1307 = vmatpush1.msra.mxu0 %v280
    %1308 = vmatprep.subr.mxu0 0.0
    %1309 = vmatpush1.msra.mxu0 %v279
    %1310 = vmatprep.subr.mxu0 0.0
    %1311 = vmatpush2.msra.mxu0 %v310
    %1312 = vmatprep.subr.mxu0 0.0
    %1313 = vmatpush2.msra.mxu0 %v309
    %1314 = vmatprep.subr.mxu0 0.0
    %1315 = vmatpush2.msra.mxu0 %v308
    %1316 = vmatprep.subr.mxu0 0.0
    %1317 = vmatpush2.msra.mxu0 %v307
    %1318 = vmatprep.subr.mxu0 0.0
    %1319 = vmatpush2.msra.mxu0 %v306
    %1320 = vmatprep.subr.mxu0 0.0
    %1321 = vmatpush2.msra.mxu0 %v305
    %1322 = vmatprep.subr.mxu0 0.0
    %1323 = vmatpush2.msra.mxu0 %v304
    %1324 = vmatprep.subr.mxu0 0.0
    %1325 = vmatpush2.msra.mxu0 %v303
    %1326 = vmatprep.subr.mxu0 0.0
    %1327 = vmatpush2.msra.mxu0 %v302
    %1328 = vmatprep.subr.mxu0 0.0
    %1329 = vmatpush2.msra.mxu0 %v301
    %1330 = vmatprep.subr.mxu0 0.0
    %1331 = vmatpush2.msra.mxu0 %v300
    %1332 = vmatprep.subr.mxu0 0.0
    %1333 = vmatpush2.msra.mxu0 %v299
    %1334 = vmatprep.subr.mxu0 0.0
    %1335 = vmatpush2.msra.mxu0 %v298
    %1336 = vmatprep.subr.mxu0 0.0
    %1337 = vmatpush2.msra.mxu0 %v297
    %1338 = vmatprep.subr.mxu0 0.0
    %1339 = vmatpush2.msra.mxu0 %v296
    %1340 = vmatprep.subr.mxu0 0.0
    %1341 = vmatpush2.msra.mxu0 %v295
    %1342 = vmatprep.mubr.f32.mxu0 %v633
    %1343 = vmatmul.mubr.f32.gmra.mxu0 %v625
    %v1344 = vpop.f32.mrf.mxu0
    %v1345 = vadd.f32 %v1275, %v1344
    %v1346 = vpop.f32.mrf.mxu0
    %1347 = vdwg.mxu0
    %1348 = vmatprep.subr.mxu0 0.0
    %1349 = vmatpush1.msra.mxu0 %v326
    %1350 = vmatprep.subr.mxu0 0.0
    %1351 = vmatpush1.msra.mxu0 %v325
    %1352 = vmatprep.subr.mxu0 0.0
    %1353 = vmatpush1.msra.mxu0 %v324
    %1354 = vmatprep.subr.mxu0 0.0
    %1355 = vmatpush1.msra.mxu0 %v323
    %1356 = vmatprep.subr.mxu0 0.0
    %1357 = vmatpush1.msra.mxu0 %v322
    %1358 = vmatprep.subr.mxu0 0.0
    %1359 = vmatpush1.msra.mxu0 %v321
    %1360 = vmatprep.subr.mxu0 0.0
    %1361 = vmatpush1.msra.mxu0 %v320
    %1362 = vmatprep.subr.mxu0 0.0
    %1363 = vmatpush1.msra.mxu0 %v319
    %1364 = vmatprep.subr.mxu0 0.0
    %1365 = vmatpush1.msra.mxu0 %v318
    %1366 = vmatprep.subr.mxu0 0.0
    %1367 = vmatpush1.msra.mxu0 %v317
    %1368 = vmatprep.subr.mxu0 0.0
    %1369 = vmatpush1.msra.mxu0 %v316
    %1370 = vmatprep.subr.mxu0 0.0
    %1371 = vmatpush1.msra.mxu0 %v315
    %1372 = vmatprep.subr.mxu0 0.0
    %1373 = vmatpush1.msra.mxu0 %v314
    %1374 = vmatprep.subr.mxu0 0.0
    %1375 = vmatpush1.msra.mxu0 %v313
    %1376 = vmatprep.subr.mxu0 0.0
    %1377 = vmatpush1.msra.mxu0 %v312
    %1378 = vmatprep.subr.mxu0 0.0
    %1379 = vmatpush1.msra.mxu0 %v311
    %1380 = vmatprep.subr.mxu0 0.0
    %1381 = vmatpush2.msra.mxu0 %v342
    %1382 = vmatprep.subr.mxu0 0.0
    %1383 = vmatpush2.msra.mxu0 %v341
    %1384 = vmatprep.subr.mxu0 0.0
    %1385 = vmatpush2.msra.mxu0 %v340
    %1386 = vmatprep.subr.mxu0 0.0
    %1387 = vmatpush2.msra.mxu0 %v339
    %1388 = vmatprep.subr.mxu0 0.0
    %1389 = vmatpush2.msra.mxu0 %v338
    %1390 = vmatprep.subr.mxu0 0.0
    %1391 = vmatpush2.msra.mxu0 %v337
    %1392 = vmatprep.subr.mxu0 0.0
    %1393 = vmatpush2.msra.mxu0 %v336
    %1394 = vmatprep.subr.mxu0 0.0
    %1395 = vmatpush2.msra.mxu0 %v335
    %1396 = vmatprep.subr.mxu0 0.0
    %1397 = vmatpush2.msra.mxu0 %v334
    %1398 = vmatprep.subr.mxu0 0.0
    %1399 = vmatpush2.msra.mxu0 %v333
    %1400 = vmatprep.subr.mxu0 0.0
    %1401 = vmatpush2.msra.mxu0 %v332
    %1402 = vmatprep.subr.mxu0 0.0
    %1403 = vmatpush2.msra.mxu0 %v331
    %1404 = vmatprep.subr.mxu0 0.0
    %1405 = vmatpush2.msra.mxu0 %v330
    %1406 = vmatprep.subr.mxu0 0.0
    %1407 = vmatpush2.msra.mxu0 %v329
    %1408 = vmatprep.subr.mxu0 0.0
    %1409 = vmatpush2.msra.mxu0 %v328
    %1410 = vmatprep.subr.mxu0 0.0
    %1411 = vmatpush2.msra.mxu0 %v327
    %1412 = vmatprep.mubr.f32.mxu0 %v634
    %1413 = vmatmul.mubr.f32.gmra.mxu0 %v632
    %v1414 = vpop.f32.mrf.mxu0
    %v1415 = vadd.f32 %v1345, %v1414
    %v1416 = vpop.f32.mrf.mxu0
    %1417 = vdwg.mxu0
    %1418 = vmatprep.subr.mxu0 0.0
    %1419 = vmatpush1.msra.mxu0 %v358
    %1420 = vmatprep.subr.mxu0 0.0
    %1421 = vmatpush1.msra.mxu0 %v357
    %1422 = vmatprep.subr.mxu0 0.0
    %1423 = vmatpush1.msra.mxu0 %v356
    %1424 = vmatprep.subr.mxu0 0.0
    %1425 = vmatpush1.msra.mxu0 %v355
    %1426 = vmatprep.subr.mxu0 0.0
    %1427 = vmatpush1.msra.mxu0 %v354
    %1428 = vmatprep.subr.mxu0 0.0
    %1429 = vmatpush1.msra.mxu0 %v353
    %1430 = vmatprep.subr.mxu0 0.0
    %1431 = vmatpush1.msra.mxu0 %v352
    %1432 = vmatprep.subr.mxu0 0.0
    %1433 = vmatpush1.msra.mxu0 %v351
    %1434 = vmatprep.subr.mxu0 0.0
    %1435 = vmatpush1.msra.mxu0 %v350
    %1436 = vmatprep.subr.mxu0 0.0
    %1437 = vmatpush1.msra.mxu0 %v349
    %1438 = vmatprep.subr.mxu0 0.0
    %1439 = vmatpush1.msra.mxu0 %v348
    %1440 = vmatprep.subr.mxu0 0.0
    %1441 = vmatpush1.msra.mxu0 %v347
    %1442 = vmatprep.subr.mxu0 0.0
    %1443 = vmatpush1.msra.mxu0 %v346
    %1444 = vmatprep.subr.mxu0 0.0
    %1445 = vmatpush1.msra.mxu0 %v345
    %1446 = vmatprep.subr.mxu0 0.0
    %1447 = vmatpush1.msra.mxu0 %v344
    %1448 = vmatprep.subr.mxu0 0.0
    %1449 = vmatpush1.msra.mxu0 %v343
    %1450 = vmatprep.subr.mxu0 0.0
    %1451 = vmatpush2.msra.mxu0 %v374
    %1452 = vmatprep.subr.mxu0 0.0
    %1453 = vmatpush2.msra.mxu0 %v373
    %1454 = vmatprep.subr.mxu0 0.0
    %1455 = vmatpush2.msra.mxu0 %v372
    %1456 = vmatprep.subr.mxu0 0.0
    %1457 = vmatpush2.msra.mxu0 %v371
    %1458 = vmatprep.subr.mxu0 0.0
    %1459 = vmatpush2.msra.mxu0 %v370
    %1460 = vmatprep.subr.mxu0 0.0
    %1461 = vmatpush2.msra.mxu0 %v369
    %1462 = vmatprep.subr.mxu0 0.0
    %1463 = vmatpush2.msra.mxu0 %v368
    %1464 = vmatprep.subr.mxu0 0.0
    %1465 = vmatpush2.msra.mxu0 %v367
    %1466 = vmatprep.subr.mxu0 0.0
    %1467 = vmatpush2.msra.mxu0 %v366
    %1468 = vmatprep.subr.mxu0 0.0
    %1469 = vmatpush2.msra.mxu0 %v365
    %1470 = vmatprep.subr.mxu0 0.0
    %1471 = vmatpush2.msra.mxu0 %v364
    %1472 = vmatprep.subr.mxu0 0.0
    %1473 = vmatpush2.msra.mxu0 %v363
    %1474 = vmatprep.subr.mxu0 0.0
    %1475 = vmatpush2.msra.mxu0 %v362
    %1476 = vmatprep.subr.mxu0 0.0
    %1477 = vmatpush2.msra.mxu0 %v361
    %1478 = vmatprep.subr.mxu0 0.0
    %1479 = vmatpush2.msra.mxu0 %v360
    %1480 = vmatprep.subr.mxu0 0.0
    %1481 = vmatpush2.msra.mxu0 %v359
    %1482 = vmatprep.mubr.f32.mxu0 %v650
    %1483 = vmatmul.mubr.f32.gmra.mxu0 %v642
    %v1484 = vpop.f32.mrf.mxu0
    %v1485 = vadd.f32 %v1415, %v1484
    %v1486 = vpop.f32.mrf.mxu0
    %1487 = vdwg.mxu0
    %1488 = vmatprep.subr.mxu0 0.0
    %1489 = vmatpush1.msra.mxu0 %v390
    %1490 = vmatprep.subr.mxu0 0.0
    %1491 = vmatpush1.msra.mxu0 %v389
    %1492 = vmatprep.subr.mxu0 0.0
    %1493 = vmatpush1.msra.mxu0 %v388
    %1494 = vmatprep.subr.mxu0 0.0
    %1495 = vmatpush1.msra.mxu0 %v387
    %1496 = vmatprep.subr.mxu0 0.0
    %1497 = vmatpush1.msra.mxu0 %v386
    %1498 = vmatprep.subr.mxu0 0.0
    %1499 = vmatpush1.msra.mxu0 %v385
    %1500 = vmatprep.subr.mxu0 0.0
    %1501 = vmatpush1.msra.mxu0 %v384
    %1502 = vmatprep.subr.mxu0 0.0
    %1503 = vmatpush1.msra.mxu0 %v383
    %1504 = vmatprep.subr.mxu0 0.0
    %1505 = vmatpush1.msra.mxu0 %v382
    %1506 = vmatprep.subr.mxu0 0.0
    %1507 = vmatpush1.msra.mxu0 %v381
    %1508 = vmatprep.subr.mxu0 0.0
    %1509 = vmatpush1.msra.mxu0 %v380
    %1510 = vmatprep.subr.mxu0 0.0
    %1511 = vmatpush1.msra.mxu0 %v379
    %1512 = vmatprep.subr.mxu0 0.0
    %1513 = vmatpush1.msra.mxu0 %v378
    %1514 = vmatprep.subr.mxu0 0.0
    %1515 = vmatpush1.msra.mxu0 %v377
    %1516 = vmatprep.subr.mxu0 0.0
    %1517 = vmatpush1.msra.mxu0 %v376
    %1518 = vmatprep.subr.mxu0 0.0
    %1519 = vmatpush1.msra.mxu0 %v375
    %1520 = vmatprep.subr.mxu0 0.0
    %1521 = vmatpush2.msra.mxu0 %v406
    %1522 = vmatprep.subr.mxu0 0.0
    %1523 = vmatpush2.msra.mxu0 %v405
    %1524 = vmatprep.subr.mxu0 0.0
    %1525 = vmatpush2.msra.mxu0 %v404
    %1526 = vmatprep.subr.mxu0 0.0
    %1527 = vmatpush2.msra.mxu0 %v403
    %1528 = vmatprep.subr.mxu0 0.0
    %1529 = vmatpush2.msra.mxu0 %v402
    %1530 = vmatprep.subr.mxu0 0.0
    %1531 = vmatpush2.msra.mxu0 %v401
    %1532 = vmatprep.subr.mxu0 0.0
    %1533 = vmatpush2.msra.mxu0 %v400
    %1534 = vmatprep.subr.mxu0 0.0
    %1535 = vmatpush2.msra.mxu0 %v399
    %1536 = vmatprep.subr.mxu0 0.0
    %1537 = vmatpush2.msra.mxu0 %v398
    %1538 = vmatprep.subr.mxu0 0.0
    %1539 = vmatpush2.msra.mxu0 %v397
    %1540 = vmatprep.subr.mxu0 0.0
    %1541 = vmatpush2.msra.mxu0 %v396
    %1542 = vmatprep.subr.mxu0 0.0
    %1543 = vmatpush2.msra.mxu0 %v395
    %1544 = vmatprep.subr.mxu0 0.0
    %1545 = vmatpush2.msra.mxu0 %v394
    %1546 = vmatprep.subr.mxu0 0.0
    %1547 = vmatpush2.msra.mxu0 %v393
    %1548 = vmatprep.subr.mxu0 0.0
    %1549 = vmatpush2.msra.mxu0 %v392
    %1550 = vmatprep.subr.mxu0 0.0
    %1551 = vmatpush2.msra.mxu0 %v391
    %1552 = vmatprep.mubr.f32.mxu0 %v651
    %1553 = vmatmul.mubr.f32.gmra.mxu0 %v649
    %v1554 = vpop.f32.mrf.mxu0
    %v1555 = vadd.f32 %v1485, %v1554
    %v1556 = vpop.f32.mrf.mxu0
    %1557 = vdwg.mxu0
    %1558 = vmatprep.subr.mxu0 0.0
    %1559 = vmatpush1.msra.mxu0 %v422
    %1560 = vmatprep.subr.mxu0 0.0
    %1561 = vmatpush1.msra.mxu0 %v421
    %1562 = vmatprep.subr.mxu0 0.0
    %1563 = vmatpush1.msra.mxu0 %v420
    %1564 = vmatprep.subr.mxu0 0.0
    %1565 = vmatpush1.msra.mxu0 %v419
    %1566 = vmatprep.subr.mxu0 0.0
    %1567 = vmatpush1.msra.mxu0 %v418
    %1568 = vmatprep.subr.mxu0 0.0
    %1569 = vmatpush1.msra.mxu0 %v417
    %1570 = vmatprep.subr.mxu0 0.0
    %1571 = vmatpush1.msra.mxu0 %v416
    %1572 = vmatprep.subr.mxu0 0.0
    %1573 = vmatpush1.msra.mxu0 %v415
    %1574 = vmatprep.subr.mxu0 0.0
    %1575 = vmatpush1.msra.mxu0 %v414
    %1576 = vmatprep.subr.mxu0 0.0
    %1577 = vmatpush1.msra.mxu0 %v413
    %1578 = vmatprep.subr.mxu0 0.0
    %1579 = vmatpush1.msra.mxu0 %v412
    %1580 = vmatprep.subr.mxu0 0.0
    %1581 = vmatpush1.msra.mxu0 %v411
    %1582 = vmatprep.subr.mxu0 0.0
    %1583 = vmatpush1.msra.mxu0 %v410
    %1584 = vmatprep.subr.mxu0 0.0
    %1585 = vmatpush1.msra.mxu0 %v409
    %1586 = vmatprep.subr.mxu0 0.0
    %1587 = vmatpush1.msra.mxu0 %v408
    %1588 = vmatprep.subr.mxu0 0.0
    %1589 = vmatpush1.msra.mxu0 %v407
    %1590 = vmatprep.subr.mxu0 0.0
    %1591 = vmatpush2.msra.mxu0 %v438
    %1592 = vmatprep.subr.mxu0 0.0
    %1593 = vmatpush2.msra.mxu0 %v437
    %1594 = vmatprep.subr.mxu0 0.0
    %1595 = vmatpush2.msra.mxu0 %v436
    %1596 = vmatprep.subr.mxu0 0.0
    %1597 = vmatpush2.msra.mxu0 %v435
    %1598 = vmatprep.subr.mxu0 0.0
    %1599 = vmatpush2.msra.mxu0 %v434
    %1600 = vmatprep.subr.mxu0 0.0
    %1601 = vmatpush2.msra.mxu0 %v433
    %1602 = vmatprep.subr.mxu0 0.0
    %1603 = vmatpush2.msra.mxu0 %v432
    %1604 = vmatprep.subr.mxu0 0.0
    %1605 = vmatpush2.msra.mxu0 %v431
    %1606 = vmatprep.subr.mxu0 0.0
    %1607 = vmatpush2.msra.mxu0 %v430
    %1608 = vmatprep.subr.mxu0 0.0
    %1609 = vmatpush2.msra.mxu0 %v429
    %1610 = vmatprep.subr.mxu0 0.0
    %1611 = vmatpush2.msra.mxu0 %v428
    %1612 = vmatprep.subr.mxu0 0.0
    %1613 = vmatpush2.msra.mxu0 %v427
    %1614 = vmatprep.subr.mxu0 0.0
    %1615 = vmatpush2.msra.mxu0 %v426
    %1616 = vmatprep.subr.mxu0 0.0
    %1617 = vmatpush2.msra.mxu0 %v425
    %1618 = vmatprep.subr.mxu0 0.0
    %1619 = vmatpush2.msra.mxu0 %v424
    %1620 = vmatprep.subr.mxu0 0.0
    %1621 = vmatpush2.msra.mxu0 %v423
    %1622 = vmatprep.mubr.f32.mxu0 %v667
    %1623 = vmatmul.mubr.f32.gmra.mxu0 %v659
    %v1624 = vpop.f32.mrf.mxu0
    %v1625 = vadd.f32 %v1555, %v1624
    %v1626 = vpop.f32.mrf.mxu0
    %1627 = vdwg.mxu0
    %1628 = vmatprep.subr.mxu0 0.0
    %1629 = vmatpush1.msra.mxu0 %v454
    %1630 = vmatprep.subr.mxu0 0.0
    %1631 = vmatpush1.msra.mxu0 %v453
    %1632 = vmatprep.subr.mxu0 0.0
    %1633 = vmatpush1.msra.mxu0 %v452
    %1634 = vmatprep.subr.mxu0 0.0
    %1635 = vmatpush1.msra.mxu0 %v451
    %1636 = vmatprep.subr.mxu0 0.0
    %1637 = vmatpush1.msra.mxu0 %v450
    %1638 = vmatprep.subr.mxu0 0.0
    %1639 = vmatpush1.msra.mxu0 %v449
    %1640 = vmatprep.subr.mxu0 0.0
    %1641 = vmatpush1.msra.mxu0 %v448
    %1642 = vmatprep.subr.mxu0 0.0
    %1643 = vmatpush1.msra.mxu0 %v447
    %1644 = vmatprep.subr.mxu0 0.0
    %1645 = vmatpush1.msra.mxu0 %v446
    %1646 = vmatprep.subr.mxu0 0.0
    %1647 = vmatpush1.msra.mxu0 %v445
    %1648 = vmatprep.subr.mxu0 0.0
    %1649 = vmatpush1.msra.mxu0 %v444
    %1650 = vmatprep.subr.mxu0 0.0
    %1651 = vmatpush1.msra.mxu0 %v443
    %1652 = vmatprep.subr.mxu0 0.0
    %1653 = vmatpush1.msra.mxu0 %v442
    %1654 = vmatprep.subr.mxu0 0.0
    %1655 = vmatpush1.msra.mxu0 %v441
    %1656 = vmatprep.subr.mxu0 0.0
    %1657 = vmatpush1.msra.mxu0 %v440
    %1658 = vmatprep.subr.mxu0 0.0
    %1659 = vmatpush1.msra.mxu0 %v439
    %1660 = vmatprep.subr.mxu0 0.0
    %1661 = vmatpush2.msra.mxu0 %v470
    %1662 = vmatprep.subr.mxu0 0.0
    %1663 = vmatpush2.msra.mxu0 %v469
    %1664 = vmatprep.subr.mxu0 0.0
    %1665 = vmatpush2.msra.mxu0 %v468
    %1666 = vmatprep.subr.mxu0 0.0
    %1667 = vmatpush2.msra.mxu0 %v467
    %1668 = vmatprep.subr.mxu0 0.0
    %1669 = vmatpush2.msra.mxu0 %v466
    %1670 = vmatprep.subr.mxu0 0.0
    %1671 = vmatpush2.msra.mxu0 %v465
    %1672 = vmatprep.subr.mxu0 0.0
    %1673 = vmatpush2.msra.mxu0 %v464
    %1674 = vmatprep.subr.mxu0 0.0
    %1675 = vmatpush2.msra.mxu0 %v463
    %1676 = vmatprep.subr.mxu0 0.0
    %1677 = vmatpush2.msra.mxu0 %v462
    %1678 = vmatprep.subr.mxu0 0.0
    %1679 = vmatpush2.msra.mxu0 %v461
    %1680 = vmatprep.subr.mxu0 0.0
    %1681 = vmatpush2.msra.mxu0 %v460
    %1682 = vmatprep.subr.mxu0 0.0
    %1683 = vmatpush2.msra.mxu0 %v459
    %1684 = vmatprep.subr.mxu0 0.0
    %1685 = vmatpush2.msra.mxu0 %v458
    %1686 = vmatprep.subr.mxu0 0.0
    %1687 = vmatpush2.msra.mxu0 %v457
    %1688 = vmatprep.subr.mxu0 0.0
    %1689 = vmatpush2.msra.mxu0 %v456
    %1690 = vmatprep.subr.mxu0 0.0
    %1691 = vmatpush2.msra.mxu0 %v455
    %1692 = vmatprep.mubr.f32.mxu0 %v668
    %1693 = vmatmul.mubr.f32.gmra.mxu0 %v666
    %v1694 = vpop.f32.mrf.mxu0
    %v1695 = vadd.f32 %v1625, %v1694
    %v1696 = vpop.f32.mrf.mxu0
    %1697 = vdwg.mxu0
    %1698 = vmatprep.subr.mxu0 0.0
    %1699 = vmatpush1.msra.mxu0 %v486
    %1700 = vmatprep.subr.mxu0 0.0
    %1701 = vmatpush1.msra.mxu0 %v485
    %1702 = vmatprep.subr.mxu0 0.0
    %1703 = vmatpush1.msra.mxu0 %v484
    %1704 = vmatprep.subr.mxu0 0.0
    %1705 = vmatpush1.msra.mxu0 %v483
    %1706 = vmatprep.subr.mxu0 0.0
    %1707 = vmatpush1.msra.mxu0 %v482
    %1708 = vmatprep.subr.mxu0 0.0
    %1709 = vmatpush1.msra.mxu0 %v481
    %1710 = vmatprep.subr.mxu0 0.0
    %1711 = vmatpush1.msra.mxu0 %v480
    %1712 = vmatprep.subr.mxu0 0.0
    %1713 = vmatpush1.msra.mxu0 %v479
    %1714 = vmatprep.subr.mxu0 0.0
    %1715 = vmatpush1.msra.mxu0 %v478
    %1716 = vmatprep.subr.mxu0 0.0
    %1717 = vmatpush1.msra.mxu0 %v477
    %1718 = vmatprep.subr.mxu0 0.0
    %1719 = vmatpush1.msra.mxu0 %v476
    %1720 = vmatprep.subr.mxu0 0.0
    %1721 = vmatpush1.msra.mxu0 %v475
    %1722 = vmatprep.subr.mxu0 0.0
    %1723 = vmatpush1.msra.mxu0 %v474
    %1724 = vmatprep.subr.mxu0 0.0
    %1725 = vmatpush1.msra.mxu0 %v473
    %1726 = vmatprep.subr.mxu0 0.0
    %1727 = vmatpush1.msra.mxu0 %v472
    %1728 = vmatprep.subr.mxu0 0.0
    %1729 = vmatpush1.msra.mxu0 %v471
    %1730 = vmatprep.subr.mxu0 0.0
    %1731 = vmatpush2.msra.mxu0 %v502
    %1732 = vmatprep.subr.mxu0 0.0
    %1733 = vmatpush2.msra.mxu0 %v501
    %1734 = vmatprep.subr.mxu0 0.0
    %1735 = vmatpush2.msra.mxu0 %v500
    %1736 = vmatprep.subr.mxu0 0.0
    %1737 = vmatpush2.msra.mxu0 %v499
    %1738 = vmatprep.subr.mxu0 0.0
    %1739 = vmatpush2.msra.mxu0 %v498
    %1740 = vmatprep.subr.mxu0 0.0
    %1741 = vmatpush2.msra.mxu0 %v497
    %1742 = vmatprep.subr.mxu0 0.0
    %1743 = vmatpush2.msra.mxu0 %v496
    %1744 = vmatprep.subr.mxu0 0.0
    %1745 = vmatpush2.msra.mxu0 %v495
    %1746 = vmatprep.subr.mxu0 0.0
    %1747 = vmatpush2.msra.mxu0 %v494
    %1748 = vmatprep.subr.mxu0 0.0
    %1749 = vmatpush2.msra.mxu0 %v493
    %1750 = vmatprep.subr.mxu0 0.0
    %1751 = vmatpush2.msra.mxu0 %v492
    %1752 = vmatprep.subr.mxu0 0.0
    %1753 = vmatpush2.msra.mxu0 %v491
    %1754 = vmatprep.subr.mxu0 0.0
    %1755 = vmatpush2.msra.mxu0 %v490
    %1756 = vmatprep.subr.mxu0 0.0
    %1757 = vmatpush2.msra.mxu0 %v489
    %1758 = vmatprep.subr.mxu0 0.0
    %1759 = vmatpush2.msra.mxu0 %v488
    %1760 = vmatprep.subr.mxu0 0.0
    %1761 = vmatpush2.msra.mxu0 %v487
    %1762 = vmatprep.mubr.f32.mxu0 %v684
    %1763 = vmatmul.mubr.f32.gmra.mxu0 %v676
    %v1764 = vpop.f32.mrf.mxu0
    %v1765 = vadd.f32 %v1695, %v1764
    %v1766 = vpop.f32.mrf.mxu0
    %1767 = vdwg.mxu0
    %1768 = vmatprep.subr.mxu0 0.0
    %1769 = vmatpush1.msra.mxu0 %v518
    %1770 = vmatprep.subr.mxu0 0.0
    %1771 = vmatpush1.msra.mxu0 %v517
    %1772 = vmatprep.subr.mxu0 0.0
    %1773 = vmatpush1.msra.mxu0 %v516
    %1774 = vmatprep.subr.mxu0 0.0
    %1775 = vmatpush1.msra.mxu0 %v515
    %1776 = vmatprep.subr.mxu0 0.0
    %1777 = vmatpush1.msra.mxu0 %v514
    %1778 = vmatprep.subr.mxu0 0.0
    %1779 = vmatpush1.msra.mxu0 %v513
    %1780 = vmatprep.subr.mxu0 0.0
    %1781 = vmatpush1.msra.mxu0 %v512
    %1782 = vmatprep.subr.mxu0 0.0
    %1783 = vmatpush1.msra.mxu0 %v511
    %1784 = vmatprep.subr.mxu0 0.0
    %1785 = vmatpush1.msra.mxu0 %v510
    %1786 = vmatprep.subr.mxu0 0.0
    %1787 = vmatpush1.msra.mxu0 %v509
    %1788 = vmatprep.subr.mxu0 0.0
    %1789 = vmatpush1.msra.mxu0 %v508
    %1790 = vmatprep.subr.mxu0 0.0
    %1791 = vmatpush1.msra.mxu0 %v507
    %1792 = vmatprep.subr.mxu0 0.0
    %1793 = vmatpush1.msra.mxu0 %v506
    %1794 = vmatprep.subr.mxu0 0.0
    %1795 = vmatpush1.msra.mxu0 %v505
    %1796 = vmatprep.subr.mxu0 0.0
    %1797 = vmatpush1.msra.mxu0 %v504
    %1798 = vmatprep.subr.mxu0 0.0
    %1799 = vmatpush1.msra.mxu0 %v503
    %1800 = vmatprep.subr.mxu0 0.0
    %1801 = vmatpush2.msra.mxu0 %v534
    %1802 = vmatprep.subr.mxu0 0.0
    %1803 = vmatpush2.msra.mxu0 %v533
    %1804 = vmatprep.subr.mxu0 0.0
    %1805 = vmatpush2.msra.mxu0 %v532
    %1806 = vmatprep.subr.mxu0 0.0
    %1807 = vmatpush2.msra.mxu0 %v531
    %1808 = vmatprep.subr.mxu0 0.0
    %1809 = vmatpush2.msra.mxu0 %v530
    %1810 = vmatprep.subr.mxu0 0.0
    %1811 = vmatpush2.msra.mxu0 %v529
    %1812 = vmatprep.subr.mxu0 0.0
    %1813 = vmatpush2.msra.mxu0 %v528
    %1814 = vmatprep.subr.mxu0 0.0
    %1815 = vmatpush2.msra.mxu0 %v527
    %1816 = vmatprep.subr.mxu0 0.0
    %1817 = vmatpush2.msra.mxu0 %v526
    %1818 = vmatprep.subr.mxu0 0.0
    %1819 = vmatpush2.msra.mxu0 %v525
    %1820 = vmatprep.subr.mxu0 0.0
    %1821 = vmatpush2.msra.mxu0 %v524
    %1822 = vmatprep.subr.mxu0 0.0
    %1823 = vmatpush2.msra.mxu0 %v523
    %1824 = vmatprep.subr.mxu0 0.0
    %1825 = vmatpush2.msra.mxu0 %v522
    %1826 = vmatprep.subr.mxu0 0.0
    %1827 = vmatpush2.msra.mxu0 %v521
    %1828 = vmatprep.subr.mxu0 0.0
    %1829 = vmatpush2.msra.mxu0 %v520
    %1830 = vmatprep.subr.mxu0 0.0
    %1831 = vmatpush2.msra.mxu0 %v519
    %1832 = vmatprep.mubr.f32.mxu0 %v685
    %1833 = vmatmul.mubr.f32.gmra.mxu0 %v683
    %v1834 = vpop.f32.mrf.mxu0
    %v1835 = vadd.f32 %v1765, %v1834
    %v1836 = vpop.f32.mrf.mxu0
    %1837 = vdwg.mxu0
    %1838 = vst [vmem:[#allocation2] sm:$0x3] %v1835
    // Predicated region
    $region14: #{simple_cnn_forward.3} parent=1 // pred_check
      _
    $region15: #{simple_cnn_forward.3} parent=1 // pred_check_branch
      %1840 = sbr.rel (0) target = $region17
    $region16: #{simple_cnn_forward.3} parent=1 // pred_region
      %s1842 = ssub.s32 32, 32
      %1843 = vsyncadd [#allocation3], %s1842
      %s1845 = sshll.u32 [#allocation2], 4
      %s1846 = int_to_ptr.vmem [resolvable:$true] %s1845
      %1848 = dma.vmem_to_hbm [thread:$0]  %s1846, 32, %s3, [#allocation3]
    $region17: #{simple_cnn_forward.3} parent=1 // pred_fallthru
      _
    // Predicated region
    $region18: #{simple_cnn_forward.3} parent=1 // pred_check
      _
    $region19: #{simple_cnn_forward.3} parent=1 // pred_check_branch
      %1850 = sbr.rel (0) target = $region21
    $region20: #{simple_cnn_forward.3} parent=1 // pred_region
      %1851 = dma.done [#allocation3], 32
    $region21: #{simple_cnn_forward.3} parent=1 // pred_fallthru
      _
    %1852 = vsyncpa [#allocation3], 1

</llo_original>
